<compile_context>
chip_gen: v7x
topology: tpu7x:2x2x1
jax: 0.10.0
libtpu: 0.0.40
codegen_flags: <defaults>
</compile_context>

<pallas_src>
import math

import jax
import jax.numpy as jnp
import numpy as np
from jax import lax
from jax.experimental import pallas as pl
from jax.experimental.pallas import tpu as pltpu

# Small deterministic problem sizes consistent with the module
T, B = 8, 8        # seq_len, batch (B must stay a multiple of 8 for aligned row blocks)
V = 50             # vocab (input_size)
E = 32             # emb_dim
H = E              # hidden == emb_dim  (nn.LSTM(emb_dim, emb_dim))
L = 3              # num_layers
O = 2              # output_size
NDIR = 2           # bidirectional

H2 = 2 * H         # fused hidden width: [fwd | bwd]
G = 8 * H          # fused gate width: [i | f | o | g], each 2H wide, dir-minor

# our gate-chunk order (i, f, o, g) -> PyTorch gate row index (i, f, g, o)
GATE_COL_ORDER = (0, 1, 3, 2)


def lstm_stack_kernel(x_ref, wp_ref, wq_ref, whh_ref, b_ref, wo_ref, bo_ref,
                      out_ref, s_ref, pg_ref):
    l = pl.program_id(0)                      # grid iterates over layers

    # ---- layer 0: seed the shared sequence buffer with [embeddings | zeros] ----
    @pl.when(l == 0)
    def _():
        s_ref[...] = x_ref[...]

    # ---- hoisted input projection (off the serial chain) ----------------------
    # s_ref row-block t holds the previous layer's [fwd_out[t] | bwd_out[T-1-t]].
    # P/Q are masked halves of the packed input weights such that
    #     pg[t] = S[t] @ P + S[T-1-t] @ Q + bias
    # is the fused (fwd@t, bwd@T-1-t) pre-gate block for recurrence step t.
    s_bf = s_ref[...].astype(jnp.bfloat16)    # bf16 operands -> single MXU pass
    pg_ref[...] = (jnp.dot(s_bf, wp_ref[0], preferred_element_type=jnp.float32)
                   + b_ref[0])
    qv = jnp.dot(s_bf, wq_ref[0], preferred_element_type=jnp.float32)
    for t in range(T):                        # static unroll: full-width block adds
        tr = T - 1 - t
        pg_ref[t * B:(t + 1) * B, :] += qv[tr * B:(tr + 1) * B, :]

    w_hh = whh_ref[0]                         # (2H, 8H) bf16, block-diagonal over dirs

    # ---- fused fwd+bwd recurrence: T serial steps per layer --------------------
    h = jnp.zeros((B, H2), jnp.float32)       # [h_fwd | h_bwd]
    c = jnp.zeros((B, H2), jnp.float32)       # [c_fwd | c_bwd]
    for t in range(T):                        # static unroll (T = 8)
        # dot first, then add the pre-gates (lets v7x fold the add into the MRB)
        gates = (jnp.dot(h.astype(jnp.bfloat16), w_hh,
                         preferred_element_type=jnp.float32)
                 + pg_ref[t * B:(t + 1) * B, :])
        sig = jax.nn.sigmoid(gates[:, :3 * H2])   # i | f | o  in one wide EUP op
        g_g = jnp.tanh(gates[:, 3 * H2:])         # g
        i_g = sig[:, 0:H2]
        f_g = sig[:, H2:2 * H2]
        o_g = sig[:, 2 * H2:3 * H2]
        c = f_g * c + i_g * g_g
        h = o_g * jnp.tanh(c)
        # ONE unmasked full-width store per step (step-order packing); the next
        # layer's P/Q split undoes the [fwd@t | bwd@T-1-t] interleave.
        s_ref[t * B:(t + 1) * B, :] = h

    # last layer: h = [fwd hidden at T-1 | bwd hidden at 0] == cat(h_last[4], h_last[5])
    @pl.when(l == L - 1)
    def _():
        out_ref[...] = (jnp.dot(h, wo_ref[...], preferred_element_type=jnp.float32)
                        + bo_ref[...])


def lstm_forward(x_pad, w_p, w_q, w_hh, b_all, wo, bo):
    grid_spec = pltpu.PrefetchScalarGridSpec(
        num_scalar_prefetch=0,
        grid=(L,),                                            # one layer per grid step;
        in_specs=[                                            # next layer's weights prefetch
            pl.BlockSpec((T * B, H2), lambda l: (0, 0)),      # padded embeddings (resident)
            pl.BlockSpec((1, H2, G), lambda l: (l, 0, 0)),    # P   (bf16, per layer)
            pl.BlockSpec((1, H2, G), lambda l: (l, 0, 0)),    # Q   (bf16, per layer)
            pl.BlockSpec((1, H2, G), lambda l: (l, 0, 0)),    # Whh (bf16, block-diag, per layer)
            pl.BlockSpec((1, 1, G), lambda l: (l, 0, 0)),     # fused biases (f32, per layer)
            pl.BlockSpec((H2, O), lambda l: (0, 0)),          # final linear weight
            pl.BlockSpec((1, O), lambda l: (0, 0)),           # final linear bias
        ],
        out_specs=pl.BlockSpec((B, O), lambda l: (0, 0)),
        scratch_shapes=[
            pltpu.VMEM((T * B, H2), jnp.float32),   # shared layer-I/O sequence (persists)
            pltpu.VMEM((T * B, G), jnp.float32),    # hoisted pre-gates for current layer
        ],
    )
    return pl.pallas_call(
        lstm_stack_kernel,
        out_shape=jax.ShapeDtypeStruct((B, O), jnp.float32),
        grid_spec=grid_spec,
        compiler_params=pltpu.CompilerParams(dimension_semantics=("arbitrary",)),
    )(x_pad, w_p, w_q, w_hh, b_all, wo, bo)


def pack_params(layers):
    """Pack PyTorch-layout params (gate rows i,f,g,o; per-direction) into the fused
    kernel layout. Gate columns: [i | f | o | g], each 2H wide with [fwd | bwd] inside.
      P: rows :H  = f-input -> fwd gate cols,  rows H: = r-input -> bwd gate cols
      Q: rows :H  = f-input -> bwd gate cols,  rows H: = r-input -> fwd gate cols
      Whh: block-diagonal over directions.  Layer 0 has no r-input (rows H: stay 0).
    """
    w_p = np.zeros((L, H2, G), np.float32)
    w_q = np.zeros((L, H2, G), np.float32)
    w_hh = np.zeros((L, H2, G), np.float32)
    b = np.zeros((L, 1, G), np.float32)
    for l, p in enumerate(layers):
        for k, tg in enumerate(GATE_COL_ORDER):
            rows = slice(tg * H, (tg + 1) * H)
            for d in range(NDIR):
                col = k * H2 + d * H
                wih_t = np.asarray(p["w_ih"][d])[rows, :].T      # (in_dim, H)
                whh_t = np.asarray(p["w_hh"][d])[rows, :].T      # (H, H)
                b[l, 0, col:col + H] = (np.asarray(p["b_ih"][d])[rows]
                                        + np.asarray(p["b_hh"][d])[rows])
                w_hh[l, d * H:(d + 1) * H, col:col + H] = whh_t
                if d == 0:                                       # fwd gate columns
                    w_p[l, :H, col:col + H] = wih_t[:H, :]
                    if l > 0:
                        w_q[l, H:, col:col + H] = wih_t[H:, :]
                else:                                            # bwd gate columns
                    w_q[l, :H, col:col + H] = wih_t[:H, :]
                    if l > 0:
                        w_p[l, H:, col:col + H] = wih_t[H:, :]
    return (jnp.asarray(w_p, jnp.bfloat16), jnp.asarray(w_q, jnp.bfloat16),
            jnp.asarray(w_hh, jnp.bfloat16), jnp.asarray(b, jnp.float32))


def ref_forward(tokens, emb_table, layers, wo, bo, mm):
    """Pure-JAX reference with PyTorch nn.LSTM semantics; `mm` selects matmul precision."""
    x = emb_table[tokens].astype(jnp.float32)            # (T, B, E)
    h_last = [None, None]
    for p in layers:
        outs = []
        for d in range(NDIR):
            w_ih, w_hh = p["w_ih"][d], p["w_hh"][d]
            bias = p["b_ih"][d] + p["b_hh"][d]
            h = jnp.zeros((B, H), jnp.float32)
            c = jnp.zeros((B, H), jnp.float32)
            seq = [None] * T
            order = range(T) if d == 0 else range(T - 1, -1, -1)
            for tt in order:
                gates = mm(x[tt], w_ih.T) + mm(h, w_hh.T) + bias
                i_g = jax.nn.sigmoid(gates[:, 0 * H:1 * H])
                f_g = jax.nn.sigmoid(gates[:, 1 * H:2 * H])
                g_g = jnp.tanh(gates[:, 2 * H:3 * H])
                o_g = jax.nn.sigmoid(gates[:, 3 * H:4 * H])
                c = f_g * c + i_g * g_g
                h = o_g * jnp.tanh(c)
                seq[tt] = h
            outs.append(jnp.stack(seq))                   # (T, B, H)
            h_last[d] = h
        x = jnp.concatenate(outs, axis=-1)                # (T, B, 2H)
    feat = jnp.concatenate(h_last, axis=1)                # (B, 2H)
    return feat @ wo + bo


if __name__ == "__main__":
    key = jax.random.PRNGKey(0)
    keys = iter(jax.random.split(key, 40))
    scale = 1.0 / math.sqrt(H)
    scale_o = 1.0 / math.sqrt(2 * H)

    # nn.Embedding(V, E)
    emb_table = jax.random.normal(next(keys), (V, E), jnp.float32)

    # nn.LSTM(E, E, num_layers=3, bidirectional=True) params in PyTorch layout
    layers = []
    for l in range(L):
        in_dim = E if l == 0 else 2 * H
        p = {"w_ih": [], "w_hh": [], "b_ih": [], "b_hh": []}
        for d in range(NDIR):
            p["w_ih"].append(jax.random.uniform(next(keys), (4 * H, in_dim), jnp.float32, -scale, scale))
            p["w_hh"].append(jax.random.uniform(next(keys), (4 * H, H), jnp.float32, -scale, scale))
            p["b_ih"].append(jax.random.uniform(next(keys), (4 * H,), jnp.float32, -scale, scale))
            p["b_hh"].append(jax.random.uniform(next(keys), (4 * H,), jnp.float32, -scale, scale))
        layers.append(p)

    # nn.Linear(2E, 2)
    lin_w = jax.random.uniform(next(keys), (O, 2 * H), jnp.float32, -scale_o, scale_o)
    lin_b = jax.random.uniform(next(keys), (O,), jnp.float32, -scale_o, scale_o)

    tokens = jax.random.randint(next(keys), (T, B), 0, V, jnp.int32)   # input_seq (T, B)

    # pack parameters into the fused kernel layout (weights in bf16)
    w_p, w_q, w_hh, b_all = pack_params(layers)
    wo = lin_w.T                          # (2H, O)
    bo = lin_b.reshape(1, O)              # (1, O)

    # host glue: embedding gather (nn.Embedding); row t*B + b corresponds to (t, b).
    # Zero-pad to the 2H-wide layer-input format consumed by the shared seq buffer.
    x = jnp.take(emb_table, tokens.reshape(-1), axis=0).astype(jnp.float32)   # (T*B, E)
    x_pad = jnp.concatenate([x, jnp.zeros((T * B, H2 - H), jnp.float32)], axis=1)

    out = jax.jit(lstm_forward)(x_pad, w_p, w_q, w_hh, b_all, wo, bo)
    jax.block_until_ready(out)

    # 1) structural check vs. a reference using the SAME bf16-operand / f32-accumulate matmuls
    def mm_bf16(a, b):
        return jnp.dot(a.astype(jnp.bfloat16), b.astype(jnp.bfloat16),
                       preferred_element_type=jnp.float32)
    ref_matched = ref_forward(tokens, emb_table, layers, wo, bo, mm_bf16)
    np.testing.assert_allclose(np.asarray(out), np.asarray(ref_matched), rtol=2e-3, atol=2e-3)

    # 2) fidelity check vs. full-f32 math of the original PyTorch module
    def mm_f32(a, b):
        return jnp.dot(a, b, precision=lax.Precision.HIGHEST)
    ref_f32 = ref_forward(tokens, emb_table, layers, wo, bo, mm_f32)
    np.testing.assert_allclose(np.asarray(out), np.asarray(ref_f32), rtol=5e-2, atol=5e-2)

    print("KERNEL_OK")
</pallas_src>

<mosaic_0001>
module attributes {stable_mosaic.version = 11 : i64} {
  func.func @lstm_stack_kernel(%arg0: i32, %arg1: memref<64x64xf32, #tpu.memory_space<vmem>>, %arg2: memref<1x64x256xbf16, #tpu.memory_space<vmem>>, %arg3: memref<1x64x256xbf16, #tpu.memory_space<vmem>>, %arg4: memref<1x64x256xbf16, #tpu.memory_space<vmem>>, %arg5: memref<1x1x256xf32, #tpu.memory_space<vmem>>, %arg6: memref<64x2xf32, #tpu.memory_space<vmem>>, %arg7: memref<1x2xf32, #tpu.memory_space<vmem>>, %arg8: memref<8x2xf32, #tpu.memory_space<vmem>>, %arg9: memref<64x64xf32, #tpu.memory_space<vmem>>, %arg10: memref<64x256xf32, #tpu.memory_space<vmem>>) attributes {dimension_semantics = [#tpu.dimension_semantics<arbitrary>], iteration_bounds = array<i64: 3>, scalar_prefetch = 0 : i64, scratch_operands = 2 : i64, tpu.core_type = #tpu.core_type<tc>, window_params = [{pipeline_mode = #tpu.pipeline_mode<synchronous>, transform_indices = @transform_0, window_bounds = array<i64: 64, 64>}, {transform_indices = @transform_1, window_bounds = array<i64: 1, 64, 256>}, {transform_indices = @transform_2, window_bounds = array<i64: 1, 64, 256>}, {transform_indices = @transform_3, window_bounds = array<i64: 1, 64, 256>}, {transform_indices = @transform_4, window_bounds = array<i64: 1, 1, 256>}, {pipeline_mode = #tpu.pipeline_mode<synchronous>, transform_indices = @transform_5, window_bounds = array<i64: 64, 2>}, {pipeline_mode = #tpu.pipeline_mode<synchronous>, transform_indices = @transform_6, window_bounds = array<i64: 1, 2>}, {pipeline_mode = #tpu.pipeline_mode<synchronous>, transform_indices = @transform_7, window_bounds = array<i64: 8, 2>}]} {
    %c0_i32 = arith.constant 0 : i32
    %0 = arith.cmpi eq, %arg0, %c0_i32 : i32
    %1 = arith.extui %0 : i1 to i32
    %c0_i32_0 = arith.constant 0 : i32
    %2 = arith.cmpi ne, %1, %c0_i32_0 : i32
    scf.if %2 {
      %c0_93 = arith.constant 0 : index
      %c0_94 = arith.constant 0 : index
      %223 = vector.load %arg1[%c0_93, %c0_94] : memref<64x64xf32, #tpu.memory_space<vmem>>, vector<64x64xf32>
      %c0_95 = arith.constant 0 : index
      %c0_96 = arith.constant 0 : index
      %224 = vector.load %arg9[%c0_95, %c0_96] : memref<64x64xf32, #tpu.memory_space<vmem>>, vector<64x64xf32>
      tpu.vector_store %arg9[%c0_95, %c0_96], %223 {strides = array<i32>} : memref<64x64xf32, #tpu.memory_space<vmem>>, vector<64x64xf32>,
    } else {
    }
    %c0 = arith.constant 0 : index
    %c0_1 = arith.constant 0 : index
    %3 = vector.load %arg9[%c0, %c0_1] : memref<64x64xf32, #tpu.memory_space<vmem>>, vector<64x64xf32>
    %4 = arith.truncf %3 : vector<64x64xf32> to vector<64x64xbf16>
    %c0_2 = arith.constant 0 : index
    %c0_3 = arith.constant 0 : index
    %c0_4 = arith.constant 0 : index
    %5 = vector.load %arg2[%c0_2, %c0_3, %c0_4] : memref<1x64x256xbf16, #tpu.memory_space<vmem>>, vector<1x64x256xbf16>
    %6 = vector.shape_cast %5 : vector<1x64x256xbf16> to vector<64x256xbf16>
    %cst = arith.constant dense<0.000000e+00> : vector<64x256xf32>
    %7 = tpu.matmul %4, %6, %cst {dimension_numbers = #tpu.dot_dimension_numbers<[1], [0], [0], [1], [0, 0, 1, 1], [], []>} : vector<64x64xbf16>, vector<64x256xbf16>, vector<64x256xf32> -> vector<64x256xf32>
    %c0_5 = arith.constant 0 : index
    %c0_6 = arith.constant 0 : index
    %c0_7 = arith.constant 0 : index
    %8 = vector.load %arg5[%c0_5, %c0_6, %c0_7] : memref<1x1x256xf32, #tpu.memory_space<vmem>>, vector<1x1x256xf32>
    %9 = vector.shape_cast %8 : vector<1x1x256xf32> to vector<1x256xf32>
    %10 = vector.broadcast %9 : vector<1x256xf32> to vector<64x256xf32>
    %11 = arith.addf %7, %10 : vector<64x256xf32>
    %c0_8 = arith.constant 0 : index
    %c0_9 = arith.constant 0 : index
    %12 = vector.load %arg10[%c0_8, %c0_9] : memref<64x256xf32, #tpu.memory_space<vmem>>, vector<64x256xf32>
    tpu.vector_store %arg10[%c0_8, %c0_9], %11 {strides = array<i32>} : memref<64x256xf32, #tpu.memory_space<vmem>>, vector<64x256xf32>,
    %c0_10 = arith.constant 0 : index
    %c0_11 = arith.constant 0 : index
    %c0_12 = arith.constant 0 : index
    %13 = vector.load %arg3[%c0_10, %c0_11, %c0_12] : memref<1x64x256xbf16, #tpu.memory_space<vmem>>, vector<1x64x256xbf16>
    %14 = vector.shape_cast %13 : vector<1x64x256xbf16> to vector<64x256xbf16>
    %cst_13 = arith.constant dense<0.000000e+00> : vector<64x256xf32>
    %15 = tpu.matmul %4, %14, %cst_13 {dimension_numbers = #tpu.dot_dimension_numbers<[1], [0], [0], [1], [0, 0, 1, 1], [], []>} : vector<64x64xbf16>, vector<64x256xbf16>, vector<64x256xf32> -> vector<64x256xf32>
    %c0_14 = arith.constant 0 : index
    %c0_15 = arith.constant 0 : index
    %16 = vector.load %arg10[%c0_14, %c0_15] : memref<64x256xf32, #tpu.memory_space<vmem>>, vector<8x256xf32>
    %17 = vector.extract_strided_slice %15 {offsets = [56, 0], sizes = [8, 256], strides = [1, 1]} : vector<64x256xf32> to vector<8x256xf32>
    %18 = arith.addf %16, %17 : vector<8x256xf32>
    %c0_16 = arith.constant 0 : index
    %c0_17 = arith.constant 0 : index
    %19 = vector.load %arg10[%c0_16, %c0_17] : memref<64x256xf32, #tpu.memory_space<vmem>>, vector<8x256xf32>
    tpu.vector_store %arg10[%c0_16, %c0_17], %18 {strides = array<i32>} : memref<64x256xf32, #tpu.memory_space<vmem>>, vector<8x256xf32>,
    %c8 = arith.constant 8 : index
    %c0_18 = arith.constant 0 : index
    %20 = vector.load %arg10[%c8, %c0_18] : memref<64x256xf32, #tpu.memory_space<vmem>>, vector<8x256xf32>
    %21 = vector.extract_strided_slice %15 {offsets = [48, 0], sizes = [8, 256], strides = [1, 1]} : vector<64x256xf32> to vector<8x256xf32>
    %22 = arith.addf %20, %21 : vector<8x256xf32>
    %c8_19 = arith.constant 8 : index
    %c0_20 = arith.constant 0 : index
    %23 = vector.load %arg10[%c8_19, %c0_20] : memref<64x256xf32, #tpu.memory_space<vmem>>, vector<8x256xf32>
    tpu.vector_store %arg10[%c8_19, %c0_20], %22 {strides = array<i32>} : memref<64x256xf32, #tpu.memory_space<vmem>>, vector<8x256xf32>,
    %c16 = arith.constant 16 : index
    %c0_21 = arith.constant 0 : index
    %24 = vector.load %arg10[%c16, %c0_21] : memref<64x256xf32, #tpu.memory_space<vmem>>, vector<8x256xf32>
    %25 = vector.extract_strided_slice %15 {offsets = [40, 0], sizes = [8, 256], strides = [1, 1]} : vector<64x256xf32> to vector<8x256xf32>
    %26 = arith.addf %24, %25 : vector<8x256xf32>
    %c16_22 = arith.constant 16 : index
    %c0_23 = arith.constant 0 : index
    %27 = vector.load %arg10[%c16_22, %c0_23] : memref<64x256xf32, #tpu.memory_space<vmem>>, vector<8x256xf32>
    tpu.vector_store %arg10[%c16_22, %c0_23], %26 {strides = array<i32>} : memref<64x256xf32, #tpu.memory_space<vmem>>, vector<8x256xf32>,
    %c24 = arith.constant 24 : index
    %c0_24 = arith.constant 0 : index
    %28 = vector.load %arg10[%c24, %c0_24] : memref<64x256xf32, #tpu.memory_space<vmem>>, vector<8x256xf32>
    %29 = vector.extract_strided_slice %15 {offsets = [32, 0], sizes = [8, 256], strides = [1, 1]} : vector<64x256xf32> to vector<8x256xf32>
    %30 = arith.addf %28, %29 : vector<8x256xf32>
    %c24_25 = arith.constant 24 : index
    %c0_26 = arith.constant 0 : index
    %31 = vector.load %arg10[%c24_25, %c0_26] : memref<64x256xf32, #tpu.memory_space<vmem>>, vector<8x256xf32>
    tpu.vector_store %arg10[%c24_25, %c0_26], %30 {strides = array<i32>} : memref<64x256xf32, #tpu.memory_space<vmem>>, vector<8x256xf32>,
    %c32 = arith.constant 32 : index
    %c0_27 = arith.constant 0 : index
    %32 = vector.load %arg10[%c32, %c0_27] : memref<64x256xf32, #tpu.memory_space<vmem>>, vector<8x256xf32>
    %33 = vector.extract_strided_slice %15 {offsets = [24, 0], sizes = [8, 256], strides = [1, 1]} : vector<64x256xf32> to vector<8x256xf32>
    %34 = arith.addf %32, %33 : vector<8x256xf32>
    %c32_28 = arith.constant 32 : index
    %c0_29 = arith.constant 0 : index
    %35 = vector.load %arg10[%c32_28, %c0_29] : memref<64x256xf32, #tpu.memory_space<vmem>>, vector<8x256xf32>
    tpu.vector_store %arg10[%c32_28, %c0_29], %34 {strides = array<i32>} : memref<64x256xf32, #tpu.memory_space<vmem>>, vector<8x256xf32>,
    %c40 = arith.constant 40 : index
    %c0_30 = arith.constant 0 : index
    %36 = vector.load %arg10[%c40, %c0_30] : memref<64x256xf32, #tpu.memory_space<vmem>>, vector<8x256xf32>
    %37 = vector.extract_strided_slice %15 {offsets = [16, 0], sizes = [8, 256], strides = [1, 1]} : vector<64x256xf32> to vector<8x256xf32>
    %38 = arith.addf %36, %37 : vector<8x256xf32>
    %c40_31 = arith.constant 40 : index
    %c0_32 = arith.constant 0 : index
    %39 = vector.load %arg10[%c40_31, %c0_32] : memref<64x256xf32, #tpu.memory_space<vmem>>, vector<8x256xf32>
    tpu.vector_store %arg10[%c40_31, %c0_32], %38 {strides = array<i32>} : memref<64x256xf32, #tpu.memory_space<vmem>>, vector<8x256xf32>,
    %c48 = arith.constant 48 : index
    %c0_33 = arith.constant 0 : index
    %40 = vector.load %arg10[%c48, %c0_33] : memref<64x256xf32, #tpu.memory_space<vmem>>, vector<8x256xf32>
    %41 = vector.extract_strided_slice %15 {offsets = [8, 0], sizes = [8, 256], strides = [1, 1]} : vector<64x256xf32> to vector<8x256xf32>
    %42 = arith.addf %40, %41 : vector<8x256xf32>
    %c48_34 = arith.constant 48 : index
    %c0_35 = arith.constant 0 : index
    %43 = vector.load %arg10[%c48_34, %c0_35] : memref<64x256xf32, #tpu.memory_space<vmem>>, vector<8x256xf32>
    tpu.vector_store %arg10[%c48_34, %c0_35], %42 {strides = array<i32>} : memref<64x256xf32, #tpu.memory_space<vmem>>, vector<8x256xf32>,
    %c56 = arith.constant 56 : index
    %c0_36 = arith.constant 0 : index
    %44 = vector.load %arg10[%c56, %c0_36] : memref<64x256xf32, #tpu.memory_space<vmem>>, vector<8x256xf32>
    %45 = vector.extract_strided_slice %15 {offsets = [0, 0], sizes = [8, 256], strides = [1, 1]} : vector<64x256xf32> to vector<8x256xf32>
    %46 = arith.addf %44, %45 : vector<8x256xf32>
    %c56_37 = arith.constant 56 : index
    %c0_38 = arith.constant 0 : index
    %47 = vector.load %arg10[%c56_37, %c0_38] : memref<64x256xf32, #tpu.memory_space<vmem>>, vector<8x256xf32>
    tpu.vector_store %arg10[%c56_37, %c0_38], %46 {strides = array<i32>} : memref<64x256xf32, #tpu.memory_space<vmem>>, vector<8x256xf32>,
    %c0_39 = arith.constant 0 : index
    %c0_40 = arith.constant 0 : index
    %c0_41 = arith.constant 0 : index
    %48 = vector.load %arg4[%c0_39, %c0_40, %c0_41] : memref<1x64x256xbf16, #tpu.memory_space<vmem>>, vector<1x64x256xbf16>
    %49 = vector.shape_cast %48 : vector<1x64x256xbf16> to vector<64x256xbf16>
    %cst_42 = arith.constant 0.000000e+00 : f32
    %50 = vector.broadcast %cst_42 : f32 to vector<8x64xf32>
    %cst_43 = arith.constant 0.000000e+00 : f32
    %51 = vector.broadcast %cst_43 : f32 to vector<8x64xf32>
    %52 = arith.truncf %50 : vector<8x64xf32> to vector<8x64xbf16>
    %cst_44 = arith.constant dense<0.000000e+00> : vector<8x256xf32>
    %53 = tpu.matmul %52, %49, %cst_44 {dimension_numbers = #tpu.dot_dimension_numbers<[1], [0], [0], [1], [0, 0, 1, 1], [], []>} : vector<8x64xbf16>, vector<64x256xbf16>, vector<8x256xf32> -> vector<8x256xf32>
    %c0_45 = arith.constant 0 : index
    %c0_46 = arith.constant 0 : index
    %54 = vector.load %arg10[%c0_45, %c0_46] : memref<64x256xf32, #tpu.memory_space<vmem>>, vector<8x256xf32>
    %55 = arith.addf %53, %54 : vector<8x256xf32>
    %56 = vector.extract_strided_slice %55 {offsets = [0, 0], sizes = [8, 192], strides = [1, 1]} : vector<8x256xf32> to vector<8x192xf32>
    %57 = arith.negf %56 : vector<8x192xf32>
    %58 = math.exp %57 : vector<8x192xf32>
    %cst_47 = arith.constant 1.000000e+00 : f32
    %59 = vector.broadcast %cst_47 : f32 to vector<8x192xf32>
    %60 = arith.addf %59, %58 : vector<8x192xf32>
    %61 = arith.divf %59, %60 : vector<8x192xf32>
    %62 = vector.extract_strided_slice %55 {offsets = [0, 192], sizes = [8, 64], strides = [1, 1]} : vector<8x256xf32> to vector<8x64xf32>
    %63 = math.tanh %62 : vector<8x64xf32>
    %64 = vector.extract_strided_slice %61 {offsets = [0, 0], sizes = [8, 64], strides = [1, 1]} : vector<8x192xf32> to vector<8x64xf32>
    %65 = vector.extract_strided_slice %61 {offsets = [0, 64], sizes = [8, 64], strides = [1, 1]} : vector<8x192xf32> to vector<8x64xf32>
    %66 = vector.extract_strided_slice %61 {offsets = [0, 128], sizes = [8, 64], strides = [1, 1]} : vector<8x192xf32> to vector<8x64xf32>
    %67 = arith.mulf %65, %51 : vector<8x64xf32>
    %68 = arith.mulf %64, %63 : vector<8x64xf32>
    %69 = arith.addf %67, %68 : vector<8x64xf32>
    %70 = math.tanh %69 : vector<8x64xf32>
    %71 = arith.mulf %66, %70 : vector<8x64xf32>
    %c0_48 = arith.constant 0 : index
    %c0_49 = arith.constant 0 : index
    %72 = vector.load %arg9[%c0_48, %c0_49] : memref<64x64xf32, #tpu.memory_space<vmem>>, vector<8x64xf32>
    tpu.vector_store %arg9[%c0_48, %c0_49], %71 {strides = array<i32>} : memref<64x64xf32, #tpu.memory_space<vmem>>, vector<8x64xf32>,
    %73 = arith.truncf %71 : vector<8x64xf32> to vector<8x64xbf16>
    %cst_50 = arith.constant dense<0.000000e+00> : vector<8x256xf32>
    %74 = tpu.matmul %73, %49, %cst_50 {dimension_numbers = #tpu.dot_dimension_numbers<[1], [0], [0], [1], [0, 0, 1, 1], [], []>} : vector<8x64xbf16>, vector<64x256xbf16>, vector<8x256xf32> -> vector<8x256xf32>
    %c8_51 = arith.constant 8 : index
    %c0_52 = arith.constant 0 : index
    %75 = vector.load %arg10[%c8_51, %c0_52] : memref<64x256xf32, #tpu.memory_space<vmem>>, vector<8x256xf32>
    %76 = arith.addf %74, %75 : vector<8x256xf32>
    %77 = vector.extract_strided_slice %76 {offsets = [0, 0], sizes = [8, 192], strides = [1, 1]} : vector<8x256xf32> to vector<8x192xf32>
    %78 = arith.negf %77 : vector<8x192xf32>
    %79 = math.exp %78 : vector<8x192xf32>
    %cst_53 = arith.constant 1.000000e+00 : f32
    %80 = vector.broadcast %cst_53 : f32 to vector<8x192xf32>
    %81 = arith.addf %80, %79 : vector<8x192xf32>
    %82 = arith.divf %80, %81 : vector<8x192xf32>
    %83 = vector.extract_strided_slice %76 {offsets = [0, 192], sizes = [8, 64], strides = [1, 1]} : vector<8x256xf32> to vector<8x64xf32>
    %84 = math.tanh %83 : vector<8x64xf32>
    %85 = vector.extract_strided_slice %82 {offsets = [0, 0], sizes = [8, 64], strides = [1, 1]} : vector<8x192xf32> to vector<8x64xf32>
    %86 = vector.extract_strided_slice %82 {offsets = [0, 64], sizes = [8, 64], strides = [1, 1]} : vector<8x192xf32> to vector<8x64xf32>
    %87 = vector.extract_strided_slice %82 {offsets = [0, 128], sizes = [8, 64], strides = [1, 1]} : vector<8x192xf32> to vector<8x64xf32>
    %88 = arith.mulf %86, %69 : vector<8x64xf32>
    %89 = arith.mulf %85, %84 : vector<8x64xf32>
    %90 = arith.addf %88, %89 : vector<8x64xf32>
    %91 = math.tanh %90 : vector<8x64xf32>
    %92 = arith.mulf %87, %91 : vector<8x64xf32>
    %c8_54 = arith.constant 8 : index
    %c0_55 = arith.constant 0 : index
    %93 = vector.load %arg9[%c8_54, %c0_55] : memref<64x64xf32, #tpu.memory_space<vmem>>, vector<8x64xf32>
    tpu.vector_store %arg9[%c8_54, %c0_55], %92 {strides = array<i32>} : memref<64x64xf32, #tpu.memory_space<vmem>>, vector<8x64xf32>,
    %94 = arith.truncf %92 : vector<8x64xf32> to vector<8x64xbf16>
    %cst_56 = arith.constant dense<0.000000e+00> : vector<8x256xf32>
    %95 = tpu.matmul %94, %49, %cst_56 {dimension_numbers = #tpu.dot_dimension_numbers<[1], [0], [0], [1], [0, 0, 1, 1], [], []>} : vector<8x64xbf16>, vector<64x256xbf16>, vector<8x256xf32> -> vector<8x256xf32>
    %c16_57 = arith.constant 16 : index
    %c0_58 = arith.constant 0 : index
    %96 = vector.load %arg10[%c16_57, %c0_58] : memref<64x256xf32, #tpu.memory_space<vmem>>, vector<8x256xf32>
    %97 = arith.addf %95, %96 : vector<8x256xf32>
    %98 = vector.extract_strided_slice %97 {offsets = [0, 0], sizes = [8, 192], strides = [1, 1]} : vector<8x256xf32> to vector<8x192xf32>
    %99 = arith.negf %98 : vector<8x192xf32>
    %100 = math.exp %99 : vector<8x192xf32>
    %cst_59 = arith.constant 1.000000e+00 : f32
    %101 = vector.broadcast %cst_59 : f32 to vector<8x192xf32>
    %102 = arith.addf %101, %100 : vector<8x192xf32>
    %103 = arith.divf %101, %102 : vector<8x192xf32>
    %104 = vector.extract_strided_slice %97 {offsets = [0, 192], sizes = [8, 64], strides = [1, 1]} : vector<8x256xf32> to vector<8x64xf32>
    %105 = math.tanh %104 : vector<8x64xf32>
    %106 = vector.extract_strided_slice %103 {offsets = [0, 0], sizes = [8, 64], strides = [1, 1]} : vector<8x192xf32> to vector<8x64xf32>
    %107 = vector.extract_strided_slice %103 {offsets = [0, 64], sizes = [8, 64], strides = [1, 1]} : vector<8x192xf32> to vector<8x64xf32>
    %108 = vector.extract_strided_slice %103 {offsets = [0, 128], sizes = [8, 64], strides = [1, 1]} : vector<8x192xf32> to vector<8x64xf32>
    %109 = arith.mulf %107, %90 : vector<8x64xf32>
    %110 = arith.mulf %106, %105 : vector<8x64xf32>
    %111 = arith.addf %109, %110 : vector<8x64xf32>
    %112 = math.tanh %111 : vector<8x64xf32>
    %113 = arith.mulf %108, %112 : vector<8x64xf32>
    %c16_60 = arith.constant 16 : index
    %c0_61 = arith.constant 0 : index
    %114 = vector.load %arg9[%c16_60, %c0_61] : memref<64x64xf32, #tpu.memory_space<vmem>>, vector<8x64xf32>
    tpu.vector_store %arg9[%c16_60, %c0_61], %113 {strides = array<i32>} : memref<64x64xf32, #tpu.memory_space<vmem>>, vector<8x64xf32>,
    %115 = arith.truncf %113 : vector<8x64xf32> to vector<8x64xbf16>
    %cst_62 = arith.constant dense<0.000000e+00> : vector<8x256xf32>
    %116 = tpu.matmul %115, %49, %cst_62 {dimension_numbers = #tpu.dot_dimension_numbers<[1], [0], [0], [1], [0, 0, 1, 1], [], []>} : vector<8x64xbf16>, vector<64x256xbf16>, vector<8x256xf32> -> vector<8x256xf32>
    %c24_63 = arith.constant 24 : index
    %c0_64 = arith.constant 0 : index
    %117 = vector.load %arg10[%c24_63, %c0_64] : memref<64x256xf32, #tpu.memory_space<vmem>>, vector<8x256xf32>
    %118 = arith.addf %116, %117 : vector<8x256xf32>
    %119 = vector.extract_strided_slice %118 {offsets = [0, 0], sizes = [8, 192], strides = [1, 1]} : vector<8x256xf32> to vector<8x192xf32>
    %120 = arith.negf %119 : vector<8x192xf32>
    %121 = math.exp %120 : vector<8x192xf32>
    %cst_65 = arith.constant 1.000000e+00 : f32
    %122 = vector.broadcast %cst_65 : f32 to vector<8x192xf32>
    %123 = arith.addf %122, %121 : vector<8x192xf32>
    %124 = arith.divf %122, %123 : vector<8x192xf32>
    %125 = vector.extract_strided_slice %118 {offsets = [0, 192], sizes = [8, 64], strides = [1, 1]} : vector<8x256xf32> to vector<8x64xf32>
    %126 = math.tanh %125 : vector<8x64xf32>
    %127 = vector.extract_strided_slice %124 {offsets = [0, 0], sizes = [8, 64], strides = [1, 1]} : vector<8x192xf32> to vector<8x64xf32>
    %128 = vector.extract_strided_slice %124 {offsets = [0, 64], sizes = [8, 64], strides = [1, 1]} : vector<8x192xf32> to vector<8x64xf32>
    %129 = vector.extract_strided_slice %124 {offsets = [0, 128], sizes = [8, 64], strides = [1, 1]} : vector<8x192xf32> to vector<8x64xf32>
    %130 = arith.mulf %128, %111 : vector<8x64xf32>
    %131 = arith.mulf %127, %126 : vector<8x64xf32>
    %132 = arith.addf %130, %131 : vector<8x64xf32>
    %133 = math.tanh %132 : vector<8x64xf32>
    %134 = arith.mulf %129, %133 : vector<8x64xf32>
    %c24_66 = arith.constant 24 : index
    %c0_67 = arith.constant 0 : index
    %135 = vector.load %arg9[%c24_66, %c0_67] : memref<64x64xf32, #tpu.memory_space<vmem>>, vector<8x64xf32>
    tpu.vector_store %arg9[%c24_66, %c0_67], %134 {strides = array<i32>} : memref<64x64xf32, #tpu.memory_space<vmem>>, vector<8x64xf32>,
    %136 = arith.truncf %134 : vector<8x64xf32> to vector<8x64xbf16>
    %cst_68 = arith.constant dense<0.000000e+00> : vector<8x256xf32>
    %137 = tpu.matmul %136, %49, %cst_68 {dimension_numbers = #tpu.dot_dimension_numbers<[1], [0], [0], [1], [0, 0, 1, 1], [], []>} : vector<8x64xbf16>, vector<64x256xbf16>, vector<8x256xf32> -> vector<8x256xf32>
    %c32_69 = arith.constant 32 : index
    %c0_70 = arith.constant 0 : index
    %138 = vector.load %arg10[%c32_69, %c0_70] : memref<64x256xf32, #tpu.memory_space<vmem>>, vector<8x256xf32>
    %139 = arith.addf %137, %138 : vector<8x256xf32>
    %140 = vector.extract_strided_slice %139 {offsets = [0, 0], sizes = [8, 192], strides = [1, 1]} : vector<8x256xf32> to vector<8x192xf32>
    %141 = arith.negf %140 : vector<8x192xf32>
    %142 = math.exp %141 : vector<8x192xf32>
    %cst_71 = arith.constant 1.000000e+00 : f32
    %143 = vector.broadcast %cst_71 : f32 to vector<8x192xf32>
    %144 = arith.addf %143, %142 : vector<8x192xf32>
    %145 = arith.divf %143, %144 : vector<8x192xf32>
    %146 = vector.extract_strided_slice %139 {offsets = [0, 192], sizes = [8, 64], strides = [1, 1]} : vector<8x256xf32> to vector<8x64xf32>
    %147 = math.tanh %146 : vector<8x64xf32>
    %148 = vector.extract_strided_slice %145 {offsets = [0, 0], sizes = [8, 64], strides = [1, 1]} : vector<8x192xf32> to vector<8x64xf32>
    %149 = vector.extract_strided_slice %145 {offsets = [0, 64], sizes = [8, 64], strides = [1, 1]} : vector<8x192xf32> to vector<8x64xf32>
    %150 = vector.extract_strided_slice %145 {offsets = [0, 128], sizes = [8, 64], strides = [1, 1]} : vector<8x192xf32> to vector<8x64xf32>
    %151 = arith.mulf %149, %132 : vector<8x64xf32>
    %152 = arith.mulf %148, %147 : vector<8x64xf32>
    %153 = arith.addf %151, %152 : vector<8x64xf32>
    %154 = math.tanh %153 : vector<8x64xf32>
    %155 = arith.mulf %150, %154 : vector<8x64xf32>
    %c32_72 = arith.constant 32 : index
    %c0_73 = arith.constant 0 : index
    %156 = vector.load %arg9[%c32_72, %c0_73] : memref<64x64xf32, #tpu.memory_space<vmem>>, vector<8x64xf32>
    tpu.vector_store %arg9[%c32_72, %c0_73], %155 {strides = array<i32>} : memref<64x64xf32, #tpu.memory_space<vmem>>, vector<8x64xf32>,
    %157 = arith.truncf %155 : vector<8x64xf32> to vector<8x64xbf16>
    %cst_74 = arith.constant dense<0.000000e+00> : vector<8x256xf32>
    %158 = tpu.matmul %157, %49, %cst_74 {dimension_numbers = #tpu.dot_dimension_numbers<[1], [0], [0], [1], [0, 0, 1, 1], [], []>} : vector<8x64xbf16>, vector<64x256xbf16>, vector<8x256xf32> -> vector<8x256xf32>
    %c40_75 = arith.constant 40 : index
    %c0_76 = arith.constant 0 : index
    %159 = vector.load %arg10[%c40_75, %c0_76] : memref<64x256xf32, #tpu.memory_space<vmem>>, vector<8x256xf32>
    %160 = arith.addf %158, %159 : vector<8x256xf32>
    %161 = vector.extract_strided_slice %160 {offsets = [0, 0], sizes = [8, 192], strides = [1, 1]} : vector<8x256xf32> to vector<8x192xf32>
    %162 = arith.negf %161 : vector<8x192xf32>
    %163 = math.exp %162 : vector<8x192xf32>
    %cst_77 = arith.constant 1.000000e+00 : f32
    %164 = vector.broadcast %cst_77 : f32 to vector<8x192xf32>
    %165 = arith.addf %164, %163 : vector<8x192xf32>
    %166 = arith.divf %164, %165 : vector<8x192xf32>
    %167 = vector.extract_strided_slice %160 {offsets = [0, 192], sizes = [8, 64], strides = [1, 1]} : vector<8x256xf32> to vector<8x64xf32>
    %168 = math.tanh %167 : vector<8x64xf32>
    %169 = vector.extract_strided_slice %166 {offsets = [0, 0], sizes = [8, 64], strides = [1, 1]} : vector<8x192xf32> to vector<8x64xf32>
    %170 = vector.extract_strided_slice %166 {offsets = [0, 64], sizes = [8, 64], strides = [1, 1]} : vector<8x192xf32> to vector<8x64xf32>
    %171 = vector.extract_strided_slice %166 {offsets = [0, 128], sizes = [8, 64], strides = [1, 1]} : vector<8x192xf32> to vector<8x64xf32>
    %172 = arith.mulf %170, %153 : vector<8x64xf32>
    %173 = arith.mulf %169, %168 : vector<8x64xf32>
    %174 = arith.addf %172, %173 : vector<8x64xf32>
    %175 = math.tanh %174 : vector<8x64xf32>
    %176 = arith.mulf %171, %175 : vector<8x64xf32>
    %c40_78 = arith.constant 40 : index
    %c0_79 = arith.constant 0 : index
    %177 = vector.load %arg9[%c40_78, %c0_79] : memref<64x64xf32, #tpu.memory_space<vmem>>, vector<8x64xf32>
    tpu.vector_store %arg9[%c40_78, %c0_79], %176 {strides = array<i32>} : memref<64x64xf32, #tpu.memory_space<vmem>>, vector<8x64xf32>,
    %178 = arith.truncf %176 : vector<8x64xf32> to vector<8x64xbf16>
    %cst_80 = arith.constant dense<0.000000e+00> : vector<8x256xf32>
    %179 = tpu.matmul %178, %49, %cst_80 {dimension_numbers = #tpu.dot_dimension_numbers<[1], [0], [0], [1], [0, 0, 1, 1], [], []>} : vector<8x64xbf16>, vector<64x256xbf16>, vector<8x256xf32> -> vector<8x256xf32>
    %c48_81 = arith.constant 48 : index
    %c0_82 = arith.constant 0 : index
    %180 = vector.load %arg10[%c48_81, %c0_82] : memref<64x256xf32, #tpu.memory_space<vmem>>, vector<8x256xf32>
    %181 = arith.addf %179, %180 : vector<8x256xf32>
    %182 = vector.extract_strided_slice %181 {offsets = [0, 0], sizes = [8, 192], strides = [1, 1]} : vector<8x256xf32> to vector<8x192xf32>
    %183 = arith.negf %182 : vector<8x192xf32>
    %184 = math.exp %183 : vector<8x192xf32>
    %cst_83 = arith.constant 1.000000e+00 : f32
    %185 = vector.broadcast %cst_83 : f32 to vector<8x192xf32>
    %186 = arith.addf %185, %184 : vector<8x192xf32>
    %187 = arith.divf %185, %186 : vector<8x192xf32>
    %188 = vector.extract_strided_slice %181 {offsets = [0, 192], sizes = [8, 64], strides = [1, 1]} : vector<8x256xf32> to vector<8x64xf32>
    %189 = math.tanh %188 : vector<8x64xf32>
    %190 = vector.extract_strided_slice %187 {offsets = [0, 0], sizes = [8, 64], strides = [1, 1]} : vector<8x192xf32> to vector<8x64xf32>
    %191 = vector.extract_strided_slice %187 {offsets = [0, 64], sizes = [8, 64], strides = [1, 1]} : vector<8x192xf32> to vector<8x64xf32>
    %192 = vector.extract_strided_slice %187 {offsets = [0, 128], sizes = [8, 64], strides = [1, 1]} : vector<8x192xf32> to vector<8x64xf32>
    %193 = arith.mulf %191, %174 : vector<8x64xf32>
    %194 = arith.mulf %190, %189 : vector<8x64xf32>
    %195 = arith.addf %193, %194 : vector<8x64xf32>
    %196 = math.tanh %195 : vector<8x64xf32>
    %197 = arith.mulf %192, %196 : vector<8x64xf32>
    %c48_84 = arith.constant 48 : index
    %c0_85 = arith.constant 0 : index
    %198 = vector.load %arg9[%c48_84, %c0_85] : memref<64x64xf32, #tpu.memory_space<vmem>>, vector<8x64xf32>
    tpu.vector_store %arg9[%c48_84, %c0_85], %197 {strides = array<i32>} : memref<64x64xf32, #tpu.memory_space<vmem>>, vector<8x64xf32>,
    %199 = arith.truncf %197 : vector<8x64xf32> to vector<8x64xbf16>
    %cst_86 = arith.constant dense<0.000000e+00> : vector<8x256xf32>
    %200 = tpu.matmul %199, %49, %cst_86 {dimension_numbers = #tpu.dot_dimension_numbers<[1], [0], [0], [1], [0, 0, 1, 1], [], []>} : vector<8x64xbf16>, vector<64x256xbf16>, vector<8x256xf32> -> vector<8x256xf32>
    %c56_87 = arith.constant 56 : index
    %c0_88 = arith.constant 0 : index
    %201 = vector.load %arg10[%c56_87, %c0_88] : memref<64x256xf32, #tpu.memory_space<vmem>>, vector<8x256xf32>
    %202 = arith.addf %200, %201 : vector<8x256xf32>
    %203 = vector.extract_strided_slice %202 {offsets = [0, 0], sizes = [8, 192], strides = [1, 1]} : vector<8x256xf32> to vector<8x192xf32>
    %204 = arith.negf %203 : vector<8x192xf32>
    %205 = math.exp %204 : vector<8x192xf32>
    %cst_89 = arith.constant 1.000000e+00 : f32
    %206 = vector.broadcast %cst_89 : f32 to vector<8x192xf32>
    %207 = arith.addf %206, %205 : vector<8x192xf32>
    %208 = arith.divf %206, %207 : vector<8x192xf32>
    %209 = vector.extract_strided_slice %202 {offsets = [0, 192], sizes = [8, 64], strides = [1, 1]} : vector<8x256xf32> to vector<8x64xf32>
    %210 = math.tanh %209 : vector<8x64xf32>
    %211 = vector.extract_strided_slice %208 {offsets = [0, 0], sizes = [8, 64], strides = [1, 1]} : vector<8x192xf32> to vector<8x64xf32>
    %212 = vector.extract_strided_slice %208 {offsets = [0, 64], sizes = [8, 64], strides = [1, 1]} : vector<8x192xf32> to vector<8x64xf32>
    %213 = vector.extract_strided_slice %208 {offsets = [0, 128], sizes = [8, 64], strides = [1, 1]} : vector<8x192xf32> to vector<8x64xf32>
    %214 = arith.mulf %212, %195 : vector<8x64xf32>
    %215 = arith.mulf %211, %210 : vector<8x64xf32>
    %216 = arith.addf %214, %215 : vector<8x64xf32>
    %217 = math.tanh %216 : vector<8x64xf32>
    %218 = arith.mulf %213, %217 : vector<8x64xf32>
    %c56_90 = arith.constant 56 : index
    %c0_91 = arith.constant 0 : index
    %219 = vector.load %arg9[%c56_90, %c0_91] : memref<64x64xf32, #tpu.memory_space<vmem>>, vector<8x64xf32>
    tpu.vector_store %arg9[%c56_90, %c0_91], %218 {strides = array<i32>} : memref<64x64xf32, #tpu.memory_space<vmem>>, vector<8x64xf32>,
    %c2_i32 = arith.constant 2 : i32
    %220 = arith.cmpi eq, %arg0, %c2_i32 : i32
    %221 = arith.extui %220 : i1 to i32
    %c0_i32_92 = arith.constant 0 : i32
    %222 = arith.cmpi ne, %221, %c0_i32_92 : i32
    scf.if %222 {
      %c0_93 = arith.constant 0 : index
      %c0_94 = arith.constant 0 : index
      %223 = vector.load %arg6[%c0_93, %c0_94] : memref<64x2xf32, #tpu.memory_space<vmem>>, vector<64x2xf32>
      %cst_95 = arith.constant dense<0.000000e+00> : vector<8x2xf32>
      %224 = tpu.matmul %218, %223, %cst_95 {dimension_numbers = #tpu.dot_dimension_numbers<[1], [0], [0], [1], [0, 0, 1, 1], [], []>} : vector<8x64xf32>, vector<64x2xf32>, vector<8x2xf32> -> vector<8x2xf32>
      %c0_96 = arith.constant 0 : index
      %c0_97 = arith.constant 0 : index
      %225 = vector.load %arg7[%c0_96, %c0_97] : memref<1x2xf32, #tpu.memory_space<vmem>>, vector<1x2xf32>
      %226 = vector.broadcast %225 : vector<1x2xf32> to vector<8x2xf32>
      %227 = arith.addf %224, %226 : vector<8x2xf32>
      %c0_98 = arith.constant 0 : index
      %c0_99 = arith.constant 0 : index
      %228 = vector.load %arg8[%c0_98, %c0_99] : memref<8x2xf32, #tpu.memory_space<vmem>>, vector<8x2xf32>
      tpu.vector_store %arg8[%c0_98, %c0_99], %227 {strides = array<i32>} : memref<8x2xf32, #tpu.memory_space<vmem>>, vector<8x2xf32>,
    } else {
    }
    return
  }
  func.func @transform_0(%arg0: i32) -> (i32, i32) {
    %c0_i32 = arith.constant 0 : i32
    %c0_i32_0 = arith.constant 0 : i32
    %c0_i32_1 = arith.constant 0 : i32
    return %c0_i32, %c0_i32_0 : i32, i32
  }
  func.func @transform_1(%arg0: i32) -> (i32, i32, i32) {
    %c0_i32 = arith.constant 0 : i32
    %c0_i32_0 = arith.constant 0 : i32
    %c0_i32_1 = arith.constant 0 : i32
    return %arg0, %c0_i32, %c0_i32_0 : i32, i32, i32
  }
  func.func @transform_2(%arg0: i32) -> (i32, i32, i32) {
    %c0_i32 = arith.constant 0 : i32
    %c0_i32_0 = arith.constant 0 : i32
    %c0_i32_1 = arith.constant 0 : i32
    return %arg0, %c0_i32, %c0_i32_0 : i32, i32, i32
  }
  func.func @transform_3(%arg0: i32) -> (i32, i32, i32) {
    %c0_i32 = arith.constant 0 : i32
    %c0_i32_0 = arith.constant 0 : i32
    %c0_i32_1 = arith.constant 0 : i32
    return %arg0, %c0_i32, %c0_i32_0 : i32, i32, i32
  }
  func.func @transform_4(%arg0: i32) -> (i32, i32, i32) {
    %c0_i32 = arith.constant 0 : i32
    %c0_i32_0 = arith.constant 0 : i32
    %c0_i32_1 = arith.constant 0 : i32
    return %arg0, %c0_i32, %c0_i32_0 : i32, i32, i32
  }
  func.func @transform_5(%arg0: i32) -> (i32, i32) {
    %c0_i32 = arith.constant 0 : i32
    %c0_i32_0 = arith.constant 0 : i32
    %c0_i32_1 = arith.constant 0 : i32
    return %c0_i32, %c0_i32_0 : i32, i32
  }
  func.func @transform_6(%arg0: i32) -> (i32, i32) {
    %c0_i32 = arith.constant 0 : i32
    %c0_i32_0 = arith.constant 0 : i32
    %c0_i32_1 = arith.constant 0 : i32
    return %c0_i32, %c0_i32_0 : i32, i32
  }
  func.func @transform_7(%arg0: i32) -> (i32, i32) {
    %c0_i32 = arith.constant 0 : i32
    %c0_i32_0 = arith.constant 0 : i32
    %c0_i32_1 = arith.constant 0 : i32
    return %c0_i32, %c0_i32_0 : i32, i32
  }
}

</mosaic_0001>

<llo_original>
// kernel: lstm_forward.1
$region0: #{lstm_forward.1}
  #allocation0 [shape = 'u32[]', space=smem, size = 0x4, offset = 0x4, fixed_abs, tag = 'smem constant byte address 0x4 - core index']
  #allocation1 [shape = 'u32[144,128]{1,0:T(1,128)}', space=vmem, size = 0x12000, scoped, tag = 'internal scratch']
  #allocation2 [shape = 'f32[64,64]{1,0:T(8,128)}', space=vmem, size = 0x8000, scoped, tag = 'scratch operand']
  #allocation3 [shape = 'f32[64,256]{1,0:T(8,128)}', space=vmem, size = 0x10000, scoped, tag = 'scratch operand']
  %s0 = inlined_call_operand.vmem [shape: f32[64,64], index: 0, kind: input, shape index: {}]
  %s1 = inlined_call_operand.hbm [shape: bf16[3,64,256], index: 1, kind: input, shape index: {}]
  %s2 = inlined_call_operand.hbm [shape: bf16[3,64,256], index: 2, kind: input, shape index: {}]
  %s3 = inlined_call_operand.hbm [shape: bf16[3,64,256], index: 3, kind: input, shape index: {}]
  %s4 = inlined_call_operand.vmem [shape: f32[3,1,256], index: 4, kind: input, shape index: {}]
  %s5 = inlined_call_operand.vmem [shape: f32[64,2], index: 5, kind: input, shape index: {}]
  %s6 = inlined_call_operand.vmem [shape: f32[1,2], index: 6, kind: input, shape index: {}]
  %s7 = inlined_call_operand.vmem [shape: f32[8,2], index: 7, kind: output, shape index: {}]
  %s8 = sld [smem:[#allocation0]]
  $region81: #{lstm_forward.1} parent=0
    _
  %s10 = ssub.s32 1, %s8
  %s11 = scalar_select 0, %s10, %s8
  $region1: #{lstm_forward.1} parent=0
    #allocation4 [shape = 'u8[65536]{0}', space=vmem, size = 0x10000, scoped, tag = 'input window, operand 1']
    #allocation5 [shape = 's32[2]{0}', space=sflag, size = 0x8, scoped, tag = 'scoped memory for lstm_forward.1']
    #allocation6 [shape = 'u8[65536]{0}', space=vmem, size = 0x10000, scoped, tag = 'input window, operand 2']
    #allocation7 [shape = 's32[2]{0}', space=sflag, size = 0x8, scoped, tag = 'scoped memory for lstm_forward.1']
    #allocation8 [shape = 'u8[65536]{0}', space=vmem, size = 0x10000, scoped, tag = 'input window, operand 3']
    %12 = vsyncpa [#allocation5], 0
    %s13 = scalar_lea.sflag [#allocation5], 1
    %14 = vsyncpa %s13, 0
    %15 = vsyncpa [#allocation7], 0
    %s16 = scalar_lea.sflag [#allocation7], 1
    %17 = vsyncpa %s16, 0
    loop: start=0, step=1, limit=5
    $region2: #{lstm_forward.1} parent=1 // loop_pre_header
      _
    $region3: #{lstm_forward.1} parent=1 // loop_header
      %s19 = sphi 0, %s23
      %p20 = scmp.ge.s32.totalorder %s19, 5
      %s27 = sphi 0, %s27
      %s29 = sphi 0, %s27
      %s30 = sphi 0, %s29
      %s44 = sphi 0, %s30
      %s50 = sphi 0, %s52
      %s53 = sphi 0, %s50
      %s54 = sphi 0, %s53
      %s70 = sphi 0, %s54
      %s76 = sphi 0, %s78
      %s79 = sphi 0, %s76
      %s80 = sphi 0, %s79
      %s96 = sphi 0, %s80
      %s102 = sphi 0, %s104
      %s105 = sphi 0, %s102
      %s106 = sphi 0, %s105
      %s122 = sphi 0, %s106
      %s128 = sphi 0, %s130
      %s131 = sphi 0, %s128
      %s132 = sphi 0, %s131
      %s148 = sphi 0, %s132
      %s152 = sphi 0, %s152
      %s154 = sphi 0, %s152
      %s155 = sphi 0, %s154
      %s169 = sphi 0, %s155
      %s173 = sphi 0, %s173
      %s175 = sphi 0, %s173
      %s176 = sphi 0, %s175
      %s190 = sphi 0, %s176
      %s194 = sphi 0, %s194
      %s196 = sphi 0, %s194
      %s197 = sphi 0, %s196
      %s211 = sphi 0, %s197
    $region4: #{lstm_forward.1} parent=1 // loop_header_branch
      %22 = sbr.rel (%p20) target = $region8
    $region5: #{lstm_forward.1} parent=1 // loop_body
      %s24 = ssub.s32 %s19, 1
      %s25 = ssub.s32 %s19, 2
      %s26 = sadd.s32 %s19, 1
      %s28 = sadd.s32 %s27, 1
      %p31 = scmp.eq.s32.totalorder %s19, 2
      %p32 = scmp.ne.s32.totalorder %s27, %s29
      %p33 = scmp.eq.s32.totalorder %s19, 0
      %p34 = por %p32, %p33
      %p35 = scmp.ne.s32.totalorder %s27, %s29
      %p36 = scmp.eq.s32.totalorder %s24, 2
      %p37 = por %p35, %p36
      %p38 = scmp.ne.s32.totalorder %s29, %s30
      %p39 = scmp.eq.s32.totalorder %s24, 0
      %p40 = por %p38, %p39
      %p41 = scmp.ne.s32.totalorder %s29, %s30
      %p42 = scmp.eq.s32.totalorder %s25, 2
      %p43 = por %p41, %p42
      %p45 = scmp.ne.s32.totalorder %s30, %s44
      %p46 = scmp.eq.s32.totalorder %s25, 0
      %p47 = por %p45, %p46
      %s48 = ssub.s32 %s19, %s26
      %p49 = scmp.eq.s32.totalorder %s48, 0
      %s51 = sadd.s32 %s50, 1
      %s52 = scalar_select %p49, %s50, %s51
      %p55 = pneg %p49
      %p56 = scmp.eq.s32.totalorder %s19, 2
      %p57 = por %p55, %p56
      %p58 = scmp.ne.s32.totalorder %s50, %s53
      %p59 = scmp.eq.s32.totalorder %s19, 0
      %p60 = por %p58, %p59
      %p61 = scmp.ne.s32.totalorder %s50, %s53
      %p62 = scmp.eq.s32.totalorder %s24, 2
      %p63 = por %p61, %p62
      %p64 = scmp.ne.s32.totalorder %s53, %s54
      %p65 = scmp.eq.s32.totalorder %s24, 0
      %p66 = por %p64, %p65
      %p67 = scmp.ne.s32.totalorder %s53, %s54
      %p68 = scmp.eq.s32.totalorder %s25, 2
      %p69 = por %p67, %p68
      %p71 = scmp.ne.s32.totalorder %s54, %s70
      %p72 = scmp.eq.s32.totalorder %s25, 0
      %p73 = por %p71, %p72
      %s74 = ssub.s32 %s19, %s26
      %p75 = scmp.eq.s32.totalorder %s74, 0
      %s77 = sadd.s32 %s76, 1
      %s78 = scalar_select %p75, %s76, %s77
      %p81 = pneg %p75
      %p82 = scmp.eq.s32.totalorder %s19, 2
      %p83 = por %p81, %p82
      %p84 = scmp.ne.s32.totalorder %s76, %s79
      %p85 = scmp.eq.s32.totalorder %s19, 0
      %p86 = por %p84, %p85
      %p87 = scmp.ne.s32.totalorder %s76, %s79
      %p88 = scmp.eq.s32.totalorder %s24, 2
      %p89 = por %p87, %p88
      %p90 = scmp.ne.s32.totalorder %s79, %s80
      %p91 = scmp.eq.s32.totalorder %s24, 0
      %p92 = por %p90, %p91
      %p93 = scmp.ne.s32.totalorder %s79, %s80
      %p94 = scmp.eq.s32.totalorder %s25, 2
      %p95 = por %p93, %p94
      %p97 = scmp.ne.s32.totalorder %s80, %s96
      %p98 = scmp.eq.s32.totalorder %s25, 0
      %p99 = por %p97, %p98
      %s100 = ssub.s32 %s19, %s26
      %p101 = scmp.eq.s32.totalorder %s100, 0
      %s103 = sadd.s32 %s102, 1
      %s104 = scalar_select %p101, %s102, %s103
      %p107 = pneg %p101
      %p108 = scmp.eq.s32.totalorder %s19, 2
      %p109 = por %p107, %p108
      %p110 = scmp.ne.s32.totalorder %s102, %s105
      %p111 = scmp.eq.s32.totalorder %s19, 0
      %p112 = por %p110, %p111
      %p113 = scmp.ne.s32.totalorder %s102, %s105
      %p114 = scmp.eq.s32.totalorder %s24, 2
      %p115 = por %p113, %p114
      %p116 = scmp.ne.s32.totalorder %s105, %s106
      %p117 = scmp.eq.s32.totalorder %s24, 0
      %p118 = por %p116, %p117
      %p119 = scmp.ne.s32.totalorder %s105, %s106
      %p120 = scmp.eq.s32.totalorder %s25, 2
      %p121 = por %p119, %p120
      %p123 = scmp.ne.s32.totalorder %s106, %s122
      %p124 = scmp.eq.s32.totalorder %s25, 0
      %p125 = por %p123, %p124
      %s126 = ssub.s32 %s19, %s26
      %p127 = scmp.eq.s32.totalorder %s126, 0
      %s129 = sadd.s32 %s128, 1
      %s130 = scalar_select %p127, %s128, %s129
      %p133 = pneg %p127
      %p134 = scmp.eq.s32.totalorder %s19, 2
      %p135 = por %p133, %p134
      %p136 = scmp.ne.s32.totalorder %s128, %s131
      %p137 = scmp.eq.s32.totalorder %s19, 0
      %p138 = por %p136, %p137
      %p139 = scmp.ne.s32.totalorder %s128, %s131
      %p140 = scmp.eq.s32.totalorder %s24, 2
      %p141 = por %p139, %p140
      %p142 = scmp.ne.s32.totalorder %s131, %s132
      %p143 = scmp.eq.s32.totalorder %s24, 0
      %p144 = por %p142, %p143
      %p145 = scmp.ne.s32.totalorder %s131, %s132
      %p146 = scmp.eq.s32.totalorder %s25, 2
      %p147 = por %p145, %p146
      %p149 = scmp.ne.s32.totalorder %s132, %s148
      %p150 = scmp.eq.s32.totalorder %s25, 0
      %p151 = por %p149, %p150
      %s153 = sadd.s32 %s152, 1
      %p156 = scmp.eq.s32.totalorder %s19, 2
      %p157 = scmp.ne.s32.totalorder %s152, %s154
      %p158 = scmp.eq.s32.totalorder %s19, 0
      %p159 = por %p157, %p158
      %p160 = scmp.ne.s32.totalorder %s152, %s154
      %p161 = scmp.eq.s32.totalorder %s24, 2
      %p162 = por %p160, %p161
      %p163 = scmp.ne.s32.totalorder %s154, %s155
      %p164 = scmp.eq.s32.totalorder %s24, 0
      %p165 = por %p163, %p164
      %p166 = scmp.ne.s32.totalorder %s154, %s155
      %p167 = scmp.eq.s32.totalorder %s25, 2
      %p168 = por %p166, %p167
      %p170 = scmp.ne.s32.totalorder %s155, %s169
      %p171 = scmp.eq.s32.totalorder %s25, 0
      %p172 = por %p170, %p171
      %s174 = sadd.s32 %s173, 1
      %p177 = scmp.eq.s32.totalorder %s19, 2
      %p178 = scmp.ne.s32.totalorder %s173, %s175
      %p179 = scmp.eq.s32.totalorder %s19, 0
      %p180 = por %p178, %p179
      %p181 = scmp.ne.s32.totalorder %s173, %s175
      %p182 = scmp.eq.s32.totalorder %s24, 2
      %p183 = por %p181, %p182
      %p184 = scmp.ne.s32.totalorder %s175, %s176
      %p185 = scmp.eq.s32.totalorder %s24, 0
      %p186 = por %p184, %p185
      %p187 = scmp.ne.s32.totalorder %s175, %s176
      %p188 = scmp.eq.s32.totalorder %s25, 2
      %p189 = por %p187, %p188
      %p191 = scmp.ne.s32.totalorder %s176, %s190
      %p192 = scmp.eq.s32.totalorder %s25, 0
      %p193 = por %p191, %p192
      %s195 = sadd.s32 %s194, 1
      %p198 = scmp.eq.s32.totalorder %s19, 2
      %p199 = scmp.ne.s32.totalorder %s194, %s196
      %p200 = scmp.eq.s32.totalorder %s19, 0
      %p201 = por %p199, %p200
      %p202 = scmp.ne.s32.totalorder %s194, %s196
      %p203 = scmp.eq.s32.totalorder %s24, 2
      %p204 = por %p202, %p203
      %p205 = scmp.ne.s32.totalorder %s196, %s197
      %p206 = scmp.eq.s32.totalorder %s24, 0
      %p207 = por %p205, %p206
      %p208 = scmp.ne.s32.totalorder %s196, %s197
      %p209 = scmp.eq.s32.totalorder %s25, 2
      %p210 = por %p208, %p209
      %p212 = scmp.ne.s32.totalorder %s197, %s211
      %p213 = scmp.eq.s32.totalorder %s25, 0
      %p214 = por %p212, %p213
      %p215 = scmp.le.s32.totalorder 1, %s19
      %p216 = scmp.lt.s32.totalorder %s19, 4
      %p217 = pnand %p215, %p216
      %p218 = pneg %p217
      // Predicated region
      $region9: #{lstm_forward.1} parent=5 // pred_check
        _
      $region10: #{lstm_forward.1} parent=5 // pred_check_branch
        %220 = sbr.rel (%p217) target = $region12
      $region11: #{lstm_forward.1} parent=5 // pred_region
        %s221 = ssub.s32 %s19, 1
        // Predicated region
        $region13: #{lstm_forward.1} parent=11 // pred_check
          %p222 = pneg %p40
        $region14: #{lstm_forward.1} parent=11 // pred_check_branch
          %224 = sbr.rel (%p222) target = $region16
        $region15: #{lstm_forward.1} parent=11 // pred_region
          _
        $region16: #{lstm_forward.1} parent=11 // pred_fallthru
          _
        // Predicated region
        $region17: #{lstm_forward.1} parent=11 // pred_check
          %p225 = pneg %p165
        $region18: #{lstm_forward.1} parent=11 // pred_check_branch
          %227 = sbr.rel (%p225) target = $region20
        $region19: #{lstm_forward.1} parent=11 // pred_region
          _
        $region20: #{lstm_forward.1} parent=11 // pred_fallthru
          _
        // Predicated region
        $region21: #{lstm_forward.1} parent=11 // pred_check
          %p228 = pneg %p186
        $region22: #{lstm_forward.1} parent=11 // pred_check_branch
          %230 = sbr.rel (%p228) target = $region24
        $region23: #{lstm_forward.1} parent=11 // pred_region
          _
        $region24: #{lstm_forward.1} parent=11 // pred_fallthru
          _
      $region12: #{lstm_forward.1} parent=5 // pred_fallthru
        _
      %p231 = scmp.lt.s32.totalorder %s19, 3
      // Predicated region
      $region25: #{lstm_forward.1} parent=5 // pred_check
        %p232 = pneg %p231
      $region26: #{lstm_forward.1} parent=5 // pred_check_branch
        %234 = sbr.rel (%p232) target = $region28
      $region27: #{lstm_forward.1} parent=5 // pred_region
        // Predicated region
        $region29: #{lstm_forward.1} parent=27 // pred_check
          %p235 = pneg %p60
        $region30: #{lstm_forward.1} parent=27 // pred_check_branch
          %237 = sbr.rel (%p235) target = $region32
        $region31: #{lstm_forward.1} parent=27 // pred_region
          %s238 = sand.u32 %s50, 1
          %s239 = scalar_lea.sflag [#allocation5], %s238
          %s240 = sand.u32 %s50, 1
          %s241 = smul.addr %s240, 64
          %s242 = scalar_lea.vmem [#allocation4], %s241
          %s244 = ssub.s32 1024, 1024
          %245 = vsyncadd %s239, %s244
          %s246 = smul.addr %s19, 16
          %s247 = smul.addr %s246, 64
          %s248 = scalar_lea.hbm %s1, %s247
          %s249 = sshll.u32 %s242, 4
          %s250 = int_to_ptr.vmem [resolvable:$true] %s249
          %255 = dma.hbm_to_vmem [thread:$0]  %s248, 1024, %s250, %s239, 128, 128, 8
        $region32: #{lstm_forward.1} parent=27 // pred_fallthru
          _
        // Predicated region
        $region33: #{lstm_forward.1} parent=27 // pred_check
          %p256 = pneg %p86
        $region34: #{lstm_forward.1} parent=27 // pred_check_branch
          %258 = sbr.rel (%p256) target = $region36
        $region35: #{lstm_forward.1} parent=27 // pred_region
          %s259 = sand.u32 %s19, 1
          %s260 = scalar_lea.sflag [#allocation7], %s259
          %s261 = sand.u32 %s76, 1
          %s262 = smul.addr %s261, 64
          %s263 = scalar_lea.vmem [#allocation6], %s262
          %s265 = ssub.s32 1024, 1024
          %266 = vsyncadd %s260, %s265
          %s267 = smul.addr %s19, 16
          %s268 = smul.addr %s267, 64
          %s269 = scalar_lea.hbm %s2, %s268
          %s270 = sshll.u32 %s263, 4
          %s271 = int_to_ptr.vmem [resolvable:$true] %s270
          %276 = dma.hbm_to_vmem [thread:$0]  %s269, 1024, %s271, %s260, 128, 128, 8
        $region36: #{lstm_forward.1} parent=27 // pred_fallthru
          _
        // Predicated region
        $region37: #{lstm_forward.1} parent=27 // pred_check
          %p277 = pneg %p112
        $region38: #{lstm_forward.1} parent=27 // pred_check_branch
          %279 = sbr.rel (%p277) target = $region40
        $region39: #{lstm_forward.1} parent=27 // pred_region
          %s280 = sand.u32 %s19, 1
          %s281 = scalar_lea.sflag [#allocation7], %s280
          %s282 = sand.u32 %s102, 1
          %s283 = smul.addr %s282, 64
          %s284 = scalar_lea.vmem [#allocation8], %s283
          %s286 = ssub.s32 1024, 1024
          %287 = vsyncadd %s281, %s286
          %s288 = smul.addr %s19, 16
          %s289 = smul.addr %s288, 64
          %s290 = scalar_lea.hbm %s3, %s289
          %s291 = sshll.u32 %s284, 4
          %s292 = int_to_ptr.vmem [resolvable:$true] %s291
          %297 = dma.hbm_to_vmem [thread:$0]  %s290, 1024, %s292, %s281, 128, 128, 8
        $region40: #{lstm_forward.1} parent=27 // pred_fallthru
          _
        // Predicated region
        $region41: #{lstm_forward.1} parent=27 // pred_check
          %p298 = pneg %p138
        $region42: #{lstm_forward.1} parent=27 // pred_check_branch
          %300 = sbr.rel (%p298) target = $region44
        $region43: #{lstm_forward.1} parent=27 // pred_region
          %p301 = scmp.lt.s32.totalorder %s19, 2
          %s302 = scalar_select %p301, %s19, 2
          %s303 = smul.addr %s302, 2
          %s304 = scalar_lea.vmem %s4, %s303
        $region44: #{lstm_forward.1} parent=27 // pred_fallthru
          _
      $region28: #{lstm_forward.1} parent=5 // pred_fallthru
        _
      %p305 = scmp.le.s32.totalorder 1, %s19
      %p306 = scmp.lt.s32.totalorder %s19, 4
      %p307 = pnand %p305, %p306
      %p308 = pneg %p307
      // Predicated region
      $region45: #{lstm_forward.1} parent=5 // pred_check
        _
      $region46: #{lstm_forward.1} parent=5 // pred_check_branch
        %310 = sbr.rel (%p307) target = $region48
      $region47: #{lstm_forward.1} parent=5 // pred_region
        %s311 = ssub.s32 %s19, 1
        %s312 = sand.u32 %s53, 1
        %s313 = scalar_lea.sflag [#allocation5], %s312
        %s314 = sand.u32 %s53, 1
        %s315 = smul.addr %s314, 64
        %s316 = scalar_lea.vmem [#allocation4], %s315
        // Predicated region
        $region49: #{lstm_forward.1} parent=47 // pred_check
          %p317 = pneg %p66
        $region50: #{lstm_forward.1} parent=47 // pred_check_branch
          %319 = sbr.rel (%p317) target = $region52
        $region51: #{lstm_forward.1} parent=47 // pred_region
          %320 = dma.done %s313, 1024
        $region52: #{lstm_forward.1} parent=47 // pred_fallthru
          _
        %s321 = sand.u32 %s24, 1
        %s322 = scalar_lea.sflag [#allocation7], %s321
        %s323 = sand.u32 %s79, 1
        %s324 = smul.addr %s323, 64
        %s325 = scalar_lea.vmem [#allocation6], %s324
        // Predicated region
        $region53: #{lstm_forward.1} parent=47 // pred_check
          %p326 = pneg %p92
        $region54: #{lstm_forward.1} parent=47 // pred_check_branch
          %328 = sbr.rel (%p326) target = $region56
        $region55: #{lstm_forward.1} parent=47 // pred_region
          %329 = dma.done %s322, 1024
        $region56: #{lstm_forward.1} parent=47 // pred_fallthru
          _
        %s330 = sand.u32 %s24, 1
        %s331 = scalar_lea.sflag [#allocation7], %s330
        %s332 = sand.u32 %s105, 1
        %s333 = smul.addr %s332, 64
        %s334 = scalar_lea.vmem [#allocation8], %s333
        // Predicated region
        $region57: #{lstm_forward.1} parent=47 // pred_check
          %p335 = pneg %p118
        $region58: #{lstm_forward.1} parent=47 // pred_check_branch
          %337 = sbr.rel (%p335) target = $region60
        $region59: #{lstm_forward.1} parent=47 // pred_region
          %338 = dma.done %s331, 1024
        $region60: #{lstm_forward.1} parent=47 // pred_fallthru
          _
        %p339 = pneg %p40
        %p340 = pneg %p37
        %s341 = sand.u32 %s53, 1
        %s342 = scalar_lea.sflag [#allocation5], %s341
        %s343 = sand.u32 %s53, 1
        %s344 = smul.addr %s343, 64
        %s345 = scalar_lea.vmem [#allocation4], %s344
        %p346 = pneg %p66
        %p347 = pneg %p63
        %s348 = sand.u32 %s24, 1
        %s349 = scalar_lea.sflag [#allocation7], %s348
        %s350 = sand.u32 %s79, 1
        %s351 = smul.addr %s350, 64
        %s352 = scalar_lea.vmem [#allocation6], %s351
        %p353 = pneg %p92
        %p354 = pneg %p89
        %s355 = sand.u32 %s24, 1
        %s356 = scalar_lea.sflag [#allocation7], %s355
        %s357 = sand.u32 %s105, 1
        %s358 = smul.addr %s357, 64
        %s359 = scalar_lea.vmem [#allocation8], %s358
        %p360 = pneg %p118
        %p361 = pneg %p115
        %p362 = scmp.lt.s32.totalorder %s24, 2
        %s363 = scalar_select %p362, %s24, 2
        %s364 = smul.addr %s363, 2
        %s365 = scalar_lea.vmem %s4, %s364
        %p366 = pneg %p144
        %p367 = pneg %p141
        %p368 = pneg %p165
        %p369 = pneg %p162
        %p370 = pneg %p186
        %p371 = pneg %p183
        %p372 = pneg %p207
        %p373 = pneg %p204
        %p374 = scmp.lt.s32.totalorder %s24, 2
        %s375 = scalar_select %p374, %s24, 2
        %s376 = smul.addr %s375, 2
        %s377 = scalar_lea.vmem %s4, %s376
        %p379 = scmp.eq.s32.totalorder %s24, 0
        // Predicated region
        $region61: #{lstm_forward.1} parent=47 // pred_check
          %p380 = pneg %p379
        $region62: #{lstm_forward.1} parent=47 // pred_check_branch
          %382 = sbr.rel (%p380) target = $region64
        $region63: #{lstm_forward.1} parent=47 // pred_region
          %v383 = vld [vmem:[%s0] sm:$0xff]
          %v384 = vld [vmem:[%s0 + $0x8] sm:$0xff]
          %v385 = vld [vmem:[%s0 + $0x10] sm:$0xff]
          %v386 = vld [vmem:[%s0 + $0x18] sm:$0xff]
          %v387 = vld [vmem:[%s0 + $0x20] sm:$0xff]
          %v388 = vld [vmem:[%s0 + $0x28] sm:$0xff]
          %v389 = vld [vmem:[%s0 + $0x30] sm:$0xff]
          %v390 = vld [vmem:[%s0 + $0x38] sm:$0xff]
          %vm391 = vcmask 523264
          %392 = vst.msk [vmem:[#allocation2] sm:$0xff] %vm391, %v383
          %393 = vst.msk [vmem:[#allocation2 + $0x8] sm:$0xff] %vm391, %v384
          %394 = vst.msk [vmem:[#allocation2 + $0x10] sm:$0xff] %vm391, %v385
          %395 = vst.msk [vmem:[#allocation2 + $0x18] sm:$0xff] %vm391, %v386
          %396 = vst.msk [vmem:[#allocation2 + $0x20] sm:$0xff] %vm391, %v387
          %397 = vst.msk [vmem:[#allocation2 + $0x28] sm:$0xff] %vm391, %v388
          %398 = vst.msk [vmem:[#allocation2 + $0x30] sm:$0xff] %vm391, %v389
          %399 = vst.msk [vmem:[#allocation2 + $0x38] sm:$0xff] %vm391, %v390
        $region64: #{lstm_forward.1} parent=47 // pred_fallthru
          _
        %v400 = vld [vmem:[#allocation2] sm:$0xff]
        %v401 = vld [vmem:[#allocation2 + $0x8] sm:$0xff]
        %v402 = vld [vmem:[#allocation2 + $0x10] sm:$0xff]
        %v403 = vld [vmem:[#allocation2 + $0x18] sm:$0xff]
        %v404 = vld [vmem:[#allocation2 + $0x20] sm:$0xff]
        %v405 = vld [vmem:[#allocation2 + $0x28] sm:$0xff]
        %v406 = vld [vmem:[#allocation2 + $0x30] sm:$0xff]
        %v407 = vld [vmem:[#allocation2 + $0x38] sm:$0xff]
        %v408 = vpack.c.bf16 %v401, %v400
        %v409 = vpack.c.bf16 %v403, %v402
        %v410 = vpack.c.bf16 %v405, %v404
        %v411 = vpack.c.bf16 %v407, %v406
        %v412 = vld [vmem:[%s316] sm:$0xff]
        %v413 = vld [vmem:[%s316 + $0x8] sm:$0xff]
        %v414 = vld [vmem:[%s316 + $0x10] sm:$0xff]
        %v415 = vld [vmem:[%s316 + $0x18] sm:$0xff]
        %v416 = vld [vmem:[%s316 + $0x20] sm:$0xff]
        %v417 = vld [vmem:[%s316 + $0x28] sm:$0xff]
        %v418 = vld [vmem:[%s316 + $0x30] sm:$0xff]
        %v419 = vld [vmem:[%s316 + $0x38] sm:$0xff]
        %v420 = vld [vmem:[%s377] sm:$0x3]
        %v422 = vlaneseq
        %v423 = vshrl.u32 %v422, 7
        %v424 = vsub.s32 0, %v423
        %v425 = vrot.slane %v420, %v424
        %v426 = vlaneseq
        %v427 = vshrl.u32 %v426, 7
        %v428 = vsub.s32 1, %v427
        %v429 = vrot.slane %v420, %v428
        %v440 = vunpack.c.l.b16 %v412
        %v441 = vunpack.c.h.b16 %v412
        %v442 = vunpack.c.l.b16 %v413
        %v443 = vunpack.c.h.b16 %v413
        %v444 = vunpack.c.l.b16 %v414
        %v445 = vunpack.c.h.b16 %v414
        %v446 = vunpack.c.l.b16 %v415
        %v447 = vunpack.c.h.b16 %v415
        %v448 = vunpack.c.l.b16 %v416
        %v449 = vunpack.c.h.b16 %v416
        %v450 = vunpack.c.l.b16 %v417
        %v451 = vunpack.c.h.b16 %v417
        %v452 = vunpack.c.l.b16 %v418
        %v453 = vunpack.c.h.b16 %v418
        %v454 = vunpack.c.l.b16 %v419
        %v455 = vunpack.c.h.b16 %v419
        %v456 = vpack.c.b16 %v442, %v440
        %v457 = vpack.c.b16 %v443, %v441
        %v458 = vpack.c.b16 %v446, %v444
        %v459 = vpack.c.b16 %v447, %v445
        %v460 = vpack.c.b16 %v450, %v448
        %v461 = vpack.c.b16 %v451, %v449
        %v462 = vpack.c.b16 %v454, %v452
        %v463 = vpack.c.b16 %v455, %v453
        %vm472 = vcmask 523264
        %v474 = vsel %vm472, %v408, 0
        %v477 = vsel %vm472, %v409, 0
        %v480 = vsel %vm472, %v410, 0
        %v483 = vsel %vm472, %v411, 0
        %485 = vmatprep.subr.bf16.mxu0 %v457
        %486 = vmatpush1.bf16.msra.mxu0 %v456
        %487 = vmatprep.subr.bf16.mxu0 %v459
        %488 = vmatpush1.bf16.msra.mxu0 %v458
        %489 = vmatprep.subr.bf16.mxu0 %v461
        %490 = vmatpush1.bf16.msra.mxu0 %v460
        %491 = vmatprep.subr.bf16.mxu0 %v463
        %492 = vmatpush1.bf16.msra.mxu0 %v462
        %493 = vmatprep.subr.bf16.mxu0 0
        %494 = vmatpush1.bf16.msra.mxu0 0
        %495 = vmatprep.subr.bf16.mxu0 0
        %496 = vmatpush1.bf16.msra.mxu0 0
        %497 = vmatprep.subr.bf16.mxu0 0
        %498 = vmatpush1.bf16.msra.mxu0 0
        %499 = vmatprep.subr.bf16.mxu0 0
        %500 = vmatpush1.bf16.msra.mxu0 0
        %501 = vmatprep.subr.bf16.mxu0 0
        %502 = vmatpush1.bf16.msra.mxu0 0
        %503 = vmatprep.subr.bf16.mxu0 0
        %504 = vmatpush1.bf16.msra.mxu0 0
        %505 = vmatprep.subr.bf16.mxu0 0
        %506 = vmatpush1.bf16.msra.mxu0 0
        %507 = vmatprep.subr.bf16.mxu0 0
        %508 = vmatpush1.bf16.msra.mxu0 0
        %509 = vmatprep.subr.bf16.mxu0 0
        %510 = vmatpush1.bf16.msra.mxu0 0
        %511 = vmatprep.subr.bf16.mxu0 0
        %512 = vmatpush1.bf16.msra.mxu0 0
        %513 = vmatprep.subr.bf16.mxu0 0
        %514 = vmatpush1.bf16.msra.mxu0 0
        %515 = vmatprep.subr.bf16.mxu0 0
        %516 = vmatpush1.bf16.msra.mxu0 0
        %517 = vmatprep.mubr.bf16.mxu0 0
        %518 = vmatmul.mubr.bf16.gmra.mrb[0].mxu0 %v474
        %v519 = vpop.f32.mrb[0].mxu0
        %v520 = vadd.f32 %v425, %v519
        %v521 = vpop.f32.mrb[0].mxu0
        %v522 = vadd.f32 %v429, %v521
        %v523 = vpop.f32.mrb[0].mxu0
        %v524 = vadd.f32 %v425, %v523
        %v525 = vpop.f32.mrb[0].mxu0
        %v526 = vadd.f32 %v429, %v525
        %527 = vmatprep.mubr.bf16.mxu0 0
        %528 = vmatmul.mubr.bf16.gmra.mrb[0].mxu0 %v477
        %v529 = vpop.f32.mrb[0].mxu0
        %v530 = vadd.f32 %v425, %v529
        %v531 = vpop.f32.mrb[0].mxu0
        %v532 = vadd.f32 %v429, %v531
        %v533 = vpop.f32.mrb[0].mxu0
        %v534 = vadd.f32 %v425, %v533
        %v535 = vpop.f32.mrb[0].mxu0
        %v536 = vadd.f32 %v429, %v535
        %537 = vmatprep.mubr.bf16.mxu0 0
        %538 = vmatmul.mubr.bf16.gmra.mrb[0].mxu0 %v480
        %v539 = vpop.f32.mrb[0].mxu0
        %v540 = vadd.f32 %v425, %v539
        %v541 = vpop.f32.mrb[0].mxu0
        %v542 = vadd.f32 %v429, %v541
        %v543 = vpop.f32.mrb[0].mxu0
        %v544 = vadd.f32 %v425, %v543
        %v545 = vpop.f32.mrb[0].mxu0
        %v546 = vadd.f32 %v429, %v545
        %547 = vmatprep.mubr.bf16.mxu0 0
        %548 = vmatmul.mubr.bf16.gmra.mrb[0].mxu0 %v483
        %v549 = vpop.f32.mrb[0].mxu0
        %v550 = vadd.f32 %v425, %v549
        %v551 = vpop.f32.mrb[0].mxu0
        %v552 = vadd.f32 %v429, %v551
        %v553 = vpop.f32.mrb[0].mxu0
        %v554 = vadd.f32 %v425, %v553
        %v555 = vpop.f32.mrb[0].mxu0
        %v556 = vadd.f32 %v429, %v555
        %557 = vdwg.mxu0
        %558 = vst [vmem:[#allocation3] sm:$0xff] %v520
        %559 = vst [vmem:[#allocation3 + $0x8] sm:$0xff] %v522
        %560 = vst [vmem:[#allocation3 + $0x10] sm:$0xff] %v524
        %561 = vst [vmem:[#allocation3 + $0x18] sm:$0xff] %v526
        %562 = vst [vmem:[#allocation3 + $0x20] sm:$0xff] %v530
        %563 = vst [vmem:[#allocation3 + $0x28] sm:$0xff] %v532
        %564 = vst [vmem:[#allocation3 + $0x30] sm:$0xff] %v534
        %565 = vst [vmem:[#allocation3 + $0x38] sm:$0xff] %v536
        %566 = vst [vmem:[#allocation3 + $0x40] sm:$0xff] %v540
        %567 = vst [vmem:[#allocation3 + $0x48] sm:$0xff] %v542
        %568 = vst [vmem:[#allocation3 + $0x50] sm:$0xff] %v544
        %569 = vst [vmem:[#allocation3 + $0x58] sm:$0xff] %v546
        %570 = vst [vmem:[#allocation3 + $0x60] sm:$0xff] %v550
        %571 = vst [vmem:[#allocation3 + $0x68] sm:$0xff] %v552
        %572 = vst [vmem:[#allocation3 + $0x70] sm:$0xff] %v554
        %573 = vst [vmem:[#allocation3 + $0x78] sm:$0xff] %v556
        %v574 = vld [vmem:[%s325] sm:$0xff]
        %v575 = vld [vmem:[%s325 + $0x8] sm:$0xff]
        %v576 = vld [vmem:[%s325 + $0x10] sm:$0xff]
        %v577 = vld [vmem:[%s325 + $0x18] sm:$0xff]
        %v578 = vld [vmem:[%s325 + $0x20] sm:$0xff]
        %v579 = vld [vmem:[%s325 + $0x28] sm:$0xff]
        %v580 = vld [vmem:[%s325 + $0x30] sm:$0xff]
        %v581 = vld [vmem:[%s325 + $0x38] sm:$0xff]
        %v590 = vunpack.c.l.b16 %v574
        %v591 = vunpack.c.h.b16 %v574
        %v592 = vunpack.c.l.b16 %v575
        %v593 = vunpack.c.h.b16 %v575
        %v594 = vunpack.c.l.b16 %v576
        %v595 = vunpack.c.h.b16 %v576
        %v596 = vunpack.c.l.b16 %v577
        %v597 = vunpack.c.h.b16 %v577
        %v598 = vunpack.c.l.b16 %v578
        %v599 = vunpack.c.h.b16 %v578
        %v600 = vunpack.c.l.b16 %v579
        %v601 = vunpack.c.h.b16 %v579
        %v602 = vunpack.c.l.b16 %v580
        %v603 = vunpack.c.h.b16 %v580
        %v604 = vunpack.c.l.b16 %v581
        %v605 = vunpack.c.h.b16 %v581
        %v606 = vpack.c.b16 %v592, %v590
        %v607 = vpack.c.b16 %v593, %v591
        %v608 = vpack.c.b16 %v596, %v594
        %v609 = vpack.c.b16 %v597, %v595
        %v610 = vpack.c.b16 %v600, %v598
        %v611 = vpack.c.b16 %v601, %v599
        %v612 = vpack.c.b16 %v604, %v602
        %v613 = vpack.c.b16 %v605, %v603
        %622 = vmatprep.subr.bf16.mxu0 %v607
        %623 = vmatpush1.bf16.msra.mxu0 %v606
        %624 = vmatprep.subr.bf16.mxu0 %v609
        %625 = vmatpush1.bf16.msra.mxu0 %v608
        %626 = vmatprep.subr.bf16.mxu0 %v611
        %627 = vmatpush1.bf16.msra.mxu0 %v610
        %628 = vmatprep.subr.bf16.mxu0 %v613
        %629 = vmatpush1.bf16.msra.mxu0 %v612
        %630 = vmatprep.subr.bf16.mxu0 0
        %631 = vmatpush1.bf16.msra.mxu0 0
        %632 = vmatprep.subr.bf16.mxu0 0
        %633 = vmatpush1.bf16.msra.mxu0 0
        %634 = vmatprep.subr.bf16.mxu0 0
        %635 = vmatpush1.bf16.msra.mxu0 0
        %636 = vmatprep.subr.bf16.mxu0 0
        %637 = vmatpush1.bf16.msra.mxu0 0
        %638 = vmatprep.subr.bf16.mxu0 0
        %639 = vmatpush1.bf16.msra.mxu0 0
        %640 = vmatprep.subr.bf16.mxu0 0
        %641 = vmatpush1.bf16.msra.mxu0 0
        %642 = vmatprep.subr.bf16.mxu0 0
        %643 = vmatpush1.bf16.msra.mxu0 0
        %644 = vmatprep.subr.bf16.mxu0 0
        %645 = vmatpush1.bf16.msra.mxu0 0
        %646 = vmatprep.subr.bf16.mxu0 0
        %647 = vmatpush1.bf16.msra.mxu0 0
        %648 = vmatprep.subr.bf16.mxu0 0
        %649 = vmatpush1.bf16.msra.mxu0 0
        %650 = vmatprep.subr.bf16.mxu0 0
        %651 = vmatpush1.bf16.msra.mxu0 0
        %652 = vmatprep.subr.bf16.mxu0 0
        %653 = vmatpush1.bf16.msra.mxu0 0
        %654 = vmatprep.mubr.bf16.mxu0 0
        %655 = vmatmul.mubr.bf16.gmra.mrb[0].mxu0 %v474
        %v656 = vpop.f32.mrb[0].mxu0
        %v657 = vadd.f32 0.0, %v656
        %v658 = vpop.f32.mrb[0].mxu0
        %v659 = vadd.f32 0.0, %v658
        %v660 = vpop.f32.mrb[0].mxu0
        %v661 = vadd.f32 0.0, %v660
        %v662 = vpop.f32.mrb[0].mxu0
        %v663 = vadd.f32 0.0, %v662
        %664 = vmatprep.mubr.bf16.mxu0 0
        %665 = vmatmul.mubr.bf16.gmra.mrb[0].mxu0 %v477
        %v666 = vpop.f32.mrb[0].mxu0
        %v667 = vadd.f32 0.0, %v666
        %v668 = vpop.f32.mrb[0].mxu0
        %v669 = vadd.f32 0.0, %v668
        %v670 = vpop.f32.mrb[0].mxu0
        %v671 = vadd.f32 0.0, %v670
        %v672 = vpop.f32.mrb[0].mxu0
        %v673 = vadd.f32 0.0, %v672
        %674 = vmatprep.mubr.bf16.mxu0 0
        %675 = vmatmul.mubr.bf16.gmra.mrb[0].mxu0 %v480
        %v676 = vpop.f32.mrb[0].mxu0
        %v677 = vadd.f32 0.0, %v676
        %v678 = vpop.f32.mrb[0].mxu0
        %v679 = vadd.f32 0.0, %v678
        %v680 = vpop.f32.mrb[0].mxu0
        %v681 = vadd.f32 0.0, %v680
        %v682 = vpop.f32.mrb[0].mxu0
        %v683 = vadd.f32 0.0, %v682
        %684 = vmatprep.mubr.bf16.mxu0 0
        %685 = vmatmul.mubr.bf16.gmra.mrb[0].mxu0 %v483
        %v686 = vpop.f32.mrb[0].mxu0
        %v687 = vadd.f32 0.0, %v686
        %v688 = vpop.f32.mrb[0].mxu0
        %v689 = vadd.f32 0.0, %v688
        %v690 = vpop.f32.mrb[0].mxu0
        %v691 = vadd.f32 0.0, %v690
        %v692 = vpop.f32.mrb[0].mxu0
        %v693 = vadd.f32 0.0, %v692
        %694 = vdwg.mxu0
        %v695 = vld [vmem:[#allocation3] sm:$0xff]
        %v696 = vld [vmem:[#allocation3 + $0x8] sm:$0xff]
        %v697 = vadd.f32 %v695, %v691
        %v698 = vadd.f32 %v696, %v693
        %699 = vst [vmem:[#allocation3] sm:$0xff] %v697
        %700 = vst [vmem:[#allocation3 + $0x8] sm:$0xff] %v698
        %v701 = vld [vmem:[#allocation3 + $0x10] sm:$0xff]
        %v702 = vld [vmem:[#allocation3 + $0x18] sm:$0xff]
        %v703 = vadd.f32 %v701, %v687
        %v704 = vadd.f32 %v702, %v689
        %705 = vst [vmem:[#allocation3 + $0x10] sm:$0xff] %v703
        %706 = vst [vmem:[#allocation3 + $0x18] sm:$0xff] %v704
        %v707 = vld [vmem:[#allocation3 + $0x20] sm:$0xff]
        %v708 = vld [vmem:[#allocation3 + $0x28] sm:$0xff]
        %v709 = vadd.f32 %v707, %v681
        %v710 = vadd.f32 %v708, %v683
        %711 = vst [vmem:[#allocation3 + $0x20] sm:$0xff] %v709
        %712 = vst [vmem:[#allocation3 + $0x28] sm:$0xff] %v710
        %v713 = vld [vmem:[#allocation3 + $0x30] sm:$0xff]
        %v714 = vld [vmem:[#allocation3 + $0x38] sm:$0xff]
        %v715 = vadd.f32 %v713, %v677
        %v716 = vadd.f32 %v714, %v679
        %717 = vst [vmem:[#allocation3 + $0x30] sm:$0xff] %v715
        %718 = vst [vmem:[#allocation3 + $0x38] sm:$0xff] %v716
        %v719 = vld [vmem:[#allocation3 + $0x40] sm:$0xff]
        %v720 = vld [vmem:[#allocation3 + $0x48] sm:$0xff]
        %v721 = vadd.f32 %v719, %v671
        %v722 = vadd.f32 %v720, %v673
        %723 = vst [vmem:[#allocation3 + $0x40] sm:$0xff] %v721
        %724 = vst [vmem:[#allocation3 + $0x48] sm:$0xff] %v722
        %v725 = vld [vmem:[#allocation3 + $0x50] sm:$0xff]
        %v726 = vld [vmem:[#allocation3 + $0x58] sm:$0xff]
        %v727 = vadd.f32 %v725, %v667
        %v728 = vadd.f32 %v726, %v669
        %729 = vst [vmem:[#allocation3 + $0x50] sm:$0xff] %v727
        %730 = vst [vmem:[#allocation3 + $0x58] sm:$0xff] %v728
        %v731 = vld [vmem:[#allocation3 + $0x60] sm:$0xff]
        %v732 = vld [vmem:[#allocation3 + $0x68] sm:$0xff]
        %v733 = vadd.f32 %v731, %v661
        %v734 = vadd.f32 %v732, %v663
        %735 = vst [vmem:[#allocation3 + $0x60] sm:$0xff] %v733
        %736 = vst [vmem:[#allocation3 + $0x68] sm:$0xff] %v734
        %v737 = vld [vmem:[#allocation3 + $0x70] sm:$0xff]
        %v738 = vld [vmem:[#allocation3 + $0x78] sm:$0xff]
        %v739 = vadd.f32 %v737, %v657
        %v740 = vadd.f32 %v738, %v659
        %741 = vst [vmem:[#allocation3 + $0x70] sm:$0xff] %v739
        %742 = vst [vmem:[#allocation3 + $0x78] sm:$0xff] %v740
        %v743 = vld [vmem:[%s334] sm:$0xff]
        %v744 = vld [vmem:[%s334 + $0x8] sm:$0xff]
        %v745 = vld [vmem:[%s334 + $0x10] sm:$0xff]
        %v746 = vld [vmem:[%s334 + $0x18] sm:$0xff]
        %v747 = vld [vmem:[%s334 + $0x20] sm:$0xff]
        %v748 = vld [vmem:[%s334 + $0x28] sm:$0xff]
        %v749 = vld [vmem:[%s334 + $0x30] sm:$0xff]
        %v750 = vld [vmem:[%s334 + $0x38] sm:$0xff]
        %v751 = vld [vmem:[#allocation3] sm:$0xff]
        %v752 = vld [vmem:[#allocation3 + $0x8] sm:$0xff]
        %v761 = vunpack.c.l.b16 %v743
        %v762 = vunpack.c.h.b16 %v743
        %v763 = vunpack.c.l.b16 %v744
        %v764 = vunpack.c.h.b16 %v744
        %v765 = vunpack.c.l.b16 %v745
        %v766 = vunpack.c.h.b16 %v745
        %v767 = vunpack.c.l.b16 %v746
        %v768 = vunpack.c.h.b16 %v746
        %v769 = vunpack.c.l.b16 %v747
        %v770 = vunpack.c.h.b16 %v747
        %v771 = vunpack.c.l.b16 %v748
        %v772 = vunpack.c.h.b16 %v748
        %v773 = vunpack.c.l.b16 %v749
        %v774 = vunpack.c.h.b16 %v749
        %v775 = vunpack.c.l.b16 %v750
        %v776 = vunpack.c.h.b16 %v750
        %v777 = vpack.c.b16 %v763, %v761
        %v778 = vpack.c.b16 %v764, %v762
        %v779 = vpack.c.b16 %v767, %v765
        %v780 = vpack.c.b16 %v768, %v766
        %v781 = vpack.c.b16 %v771, %v769
        %v782 = vpack.c.b16 %v772, %v770
        %v783 = vpack.c.b16 %v775, %v773
        %v784 = vpack.c.b16 %v776, %v774
        %v794 = vsel %vm472, 0, 0
        %796 = vmatprep.subr.bf16.mxu0 %v778
        %797 = vmatpush1.bf16.msra.mxu0 %v777
        %798 = vmatprep.subr.bf16.mxu0 %v780
        %799 = vmatpush1.bf16.msra.mxu0 %v779
        %800 = vmatprep.subr.bf16.mxu0 %v782
        %801 = vmatpush1.bf16.msra.mxu0 %v781
        %802 = vmatprep.subr.bf16.mxu0 %v784
        %803 = vmatpush1.bf16.msra.mxu0 %v783
        %804 = vmatprep.subr.bf16.mxu0 0
        %805 = vmatpush1.bf16.msra.mxu0 0
        %806 = vmatprep.subr.bf16.mxu0 0
        %807 = vmatpush1.bf16.msra.mxu0 0
        %808 = vmatprep.subr.bf16.mxu0 0
        %809 = vmatpush1.bf16.msra.mxu0 0
        %810 = vmatprep.subr.bf16.mxu0 0
        %811 = vmatpush1.bf16.msra.mxu0 0
        %812 = vmatprep.subr.bf16.mxu0 0
        %813 = vmatpush1.bf16.msra.mxu0 0
        %814 = vmatprep.subr.bf16.mxu0 0
        %815 = vmatpush1.bf16.msra.mxu0 0
        %816 = vmatprep.subr.bf16.mxu0 0
        %817 = vmatpush1.bf16.msra.mxu0 0
        %818 = vmatprep.subr.bf16.mxu0 0
        %819 = vmatpush1.bf16.msra.mxu0 0
        %820 = vmatprep.subr.bf16.mxu0 0
        %821 = vmatpush1.bf16.msra.mxu0 0
        %822 = vmatprep.subr.bf16.mxu0 0
        %823 = vmatpush1.bf16.msra.mxu0 0
        %824 = vmatprep.subr.bf16.mxu0 0
        %825 = vmatpush1.bf16.msra.mxu0 0
        %826 = vmatprep.subr.bf16.mxu0 0
        %827 = vmatpush1.bf16.msra.mxu0 0
        %828 = vmatprep.mubr.bf16.mxu0 0
        %829 = vmatmul.mubr.bf16.gmra.mrb[0].mxu0 %v794
        %v830 = vpop.f32.mrb[0].mxu0
        %v831 = vadd.f32 %v751, %v830
        %v832 = vpop.f32.mrb[0].mxu0
        %v833 = vadd.f32 %v752, %v832
        %v834 = vpop.f32.mrb[0].mxu0
        %v835 = vpop.f32.mrb[0].mxu0
        %836 = vdwg.mxu0
        %v837 = vxor.u32 %v831, 2147483648
        %v838 = vxor.u32 %v833, 2147483648
        %v839 = vmul.f32 %v837, 1.442695
        %v840 = vpow.pop %v839
        %v841 = vmul.f32 %v838, 1.442695
        %v842 = vpow.pop %v841
        %v843 = vadd.f32 %v840, 1.0
        %v844 = vadd.f32 %v842, 1.0
        %v845 = vrcp.pop %v843
        %v846 = vmul.f32 1.0, %v845
        %v847 = vrcp.pop %v844
        %v848 = vmul.f32 1.0, %v847
        %v849 = vtanh.pop %v833
        %v850 = vmul.f32 %v846, 0.0
        %852 = vrot.lane.b32.xlu0 %v849, 64
        %v853 = vpop.permute.xlu0 %852
        %v855 = vmul.f32 %v846, %v853
        %857 = vrot.lane.b32.xlu0 %v855, 64
        %v858 = vpop.permute.xlu0 %857
        %v860 = vadd.f32 %v850, %v858
        %v861 = vtanh.pop %v860
        %863 = vrot.lane.b32.xlu0 %v861, 64
        %v864 = vpop.permute.xlu0 %863
        %v866 = vmul.f32 %v848, %v864
        %867 = vst.msk [vmem:[#allocation2] sm:$0xff] %vm472, %v866
        %v868 = vpack.c.bf16 %v866, %v866
        %v869 = vld [vmem:[#allocation3 + $0x10] sm:$0xff]
        %v870 = vld [vmem:[#allocation3 + $0x18] sm:$0xff]
        %v872 = vsel %vm472, %v868, 0
        %874 = vmatprep.subr.bf16.mxu0 %v778
        %875 = vmatpush1.bf16.msra.mxu0 %v777
        %876 = vmatprep.subr.bf16.mxu0 %v780
        %877 = vmatpush1.bf16.msra.mxu0 %v779
        %878 = vmatprep.subr.bf16.mxu0 %v782
        %879 = vmatpush1.bf16.msra.mxu0 %v781
        %880 = vmatprep.subr.bf16.mxu0 %v784
        %881 = vmatpush1.bf16.msra.mxu0 %v783
        %882 = vmatprep.subr.bf16.mxu0 0
        %883 = vmatpush1.bf16.msra.mxu0 0
        %884 = vmatprep.subr.bf16.mxu0 0
        %885 = vmatpush1.bf16.msra.mxu0 0
        %886 = vmatprep.subr.bf16.mxu0 0
        %887 = vmatpush1.bf16.msra.mxu0 0
        %888 = vmatprep.subr.bf16.mxu0 0
        %889 = vmatpush1.bf16.msra.mxu0 0
        %890 = vmatprep.subr.bf16.mxu0 0
        %891 = vmatpush1.bf16.msra.mxu0 0
        %892 = vmatprep.subr.bf16.mxu0 0
        %893 = vmatpush1.bf16.msra.mxu0 0
        %894 = vmatprep.subr.bf16.mxu0 0
        %895 = vmatpush1.bf16.msra.mxu0 0
        %896 = vmatprep.subr.bf16.mxu0 0
        %897 = vmatpush1.bf16.msra.mxu0 0
        %898 = vmatprep.subr.bf16.mxu0 0
        %899 = vmatpush1.bf16.msra.mxu0 0
        %900 = vmatprep.subr.bf16.mxu0 0
        %901 = vmatpush1.bf16.msra.mxu0 0
        %902 = vmatprep.subr.bf16.mxu0 0
        %903 = vmatpush1.bf16.msra.mxu0 0
        %904 = vmatprep.subr.bf16.mxu0 0
        %905 = vmatpush1.bf16.msra.mxu0 0
        %906 = vmatprep.mubr.bf16.mxu0 0
        %907 = vmatmul.mubr.bf16.gmra.mrb[0].mxu0 %v872
        %v908 = vpop.f32.mrb[0].mxu0
        %v909 = vadd.f32 %v869, %v908
        %v910 = vpop.f32.mrb[0].mxu0
        %v911 = vadd.f32 %v870, %v910
        %v912 = vpop.f32.mrb[0].mxu0
        %v913 = vpop.f32.mrb[0].mxu0
        %914 = vdwg.mxu0
        %v915 = vxor.u32 %v909, 2147483648
        %v916 = vxor.u32 %v911, 2147483648
        %v917 = vmul.f32 %v915, 1.442695
        %v918 = vpow.pop %v917
        %v919 = vmul.f32 %v916, 1.442695
        %v920 = vpow.pop %v919
        %v921 = vadd.f32 %v918, 1.0
        %v922 = vadd.f32 %v920, 1.0
        %v923 = vrcp.pop %v921
        %v924 = vmul.f32 1.0, %v923
        %v925 = vrcp.pop %v922
        %v926 = vmul.f32 1.0, %v925
        %v927 = vtanh.pop %v911
        %v928 = vmul.f32 %v924, %v860
        %930 = vrot.lane.b32.xlu0 %v927, 64
        %v931 = vpop.permute.xlu0 %930
        %v933 = vmul.f32 %v924, %v931
        %935 = vrot.lane.b32.xlu0 %v933, 64
        %v936 = vpop.permute.xlu0 %935
        %v938 = vadd.f32 %v928, %v936
        %v939 = vtanh.pop %v938
        %941 = vrot.lane.b32.xlu0 %v939, 64
        %v942 = vpop.permute.xlu0 %941
        %v944 = vmul.f32 %v926, %v942
        %945 = vst.msk [vmem:[#allocation2 + $0x8] sm:$0xff] %vm472, %v944
        %v946 = vpack.c.bf16 %v944, %v944
        %v947 = vld [vmem:[#allocation3 + $0x20] sm:$0xff]
        %v948 = vld [vmem:[#allocation3 + $0x28] sm:$0xff]
        %v950 = vsel %vm472, %v946, 0
        %952 = vmatprep.subr.bf16.mxu0 %v778
        %953 = vmatpush1.bf16.msra.mxu0 %v777
        %954 = vmatprep.subr.bf16.mxu0 %v780
        %955 = vmatpush1.bf16.msra.mxu0 %v779
        %956 = vmatprep.subr.bf16.mxu0 %v782
        %957 = vmatpush1.bf16.msra.mxu0 %v781
        %958 = vmatprep.subr.bf16.mxu0 %v784
        %959 = vmatpush1.bf16.msra.mxu0 %v783
        %960 = vmatprep.subr.bf16.mxu0 0
        %961 = vmatpush1.bf16.msra.mxu0 0
        %962 = vmatprep.subr.bf16.mxu0 0
        %963 = vmatpush1.bf16.msra.mxu0 0
        %964 = vmatprep.subr.bf16.mxu0 0
        %965 = vmatpush1.bf16.msra.mxu0 0
        %966 = vmatprep.subr.bf16.mxu0 0
        %967 = vmatpush1.bf16.msra.mxu0 0
        %968 = vmatprep.subr.bf16.mxu0 0
        %969 = vmatpush1.bf16.msra.mxu0 0
        %970 = vmatprep.subr.bf16.mxu0 0
        %971 = vmatpush1.bf16.msra.mxu0 0
        %972 = vmatprep.subr.bf16.mxu0 0
        %973 = vmatpush1.bf16.msra.mxu0 0
        %974 = vmatprep.subr.bf16.mxu0 0
        %975 = vmatpush1.bf16.msra.mxu0 0
        %976 = vmatprep.subr.bf16.mxu0 0
        %977 = vmatpush1.bf16.msra.mxu0 0
        %978 = vmatprep.subr.bf16.mxu0 0
        %979 = vmatpush1.bf16.msra.mxu0 0
        %980 = vmatprep.subr.bf16.mxu0 0
        %981 = vmatpush1.bf16.msra.mxu0 0
        %982 = vmatprep.subr.bf16.mxu0 0
        %983 = vmatpush1.bf16.msra.mxu0 0
        %984 = vmatprep.mubr.bf16.mxu0 0
        %985 = vmatmul.mubr.bf16.gmra.mrb[0].mxu0 %v950
        %v986 = vpop.f32.mrb[0].mxu0
        %v987 = vadd.f32 %v947, %v986
        %v988 = vpop.f32.mrb[0].mxu0
        %v989 = vadd.f32 %v948, %v988
        %v990 = vpop.f32.mrb[0].mxu0
        %v991 = vpop.f32.mrb[0].mxu0
        %992 = vdwg.mxu0
        %v993 = vxor.u32 %v987, 2147483648
        %v994 = vxor.u32 %v989, 2147483648
        %v995 = vmul.f32 %v993, 1.442695
        %v996 = vpow.pop %v995
        %v997 = vmul.f32 %v994, 1.442695
        %v998 = vpow.pop %v997
        %v999 = vadd.f32 %v996, 1.0
        %v1000 = vadd.f32 %v998, 1.0
        %v1001 = vrcp.pop %v999
        %v1002 = vmul.f32 1.0, %v1001
        %v1003 = vrcp.pop %v1000
        %v1004 = vmul.f32 1.0, %v1003
        %v1005 = vtanh.pop %v989
        %v1006 = vmul.f32 %v1002, %v938
        %1008 = vrot.lane.b32.xlu0 %v1005, 64
        %v1009 = vpop.permute.xlu0 %1008
        %v1011 = vmul.f32 %v1002, %v1009
        %1013 = vrot.lane.b32.xlu0 %v1011, 64
        %v1014 = vpop.permute.xlu0 %1013
        %v1016 = vadd.f32 %v1006, %v1014
        %v1017 = vtanh.pop %v1016
        %1019 = vrot.lane.b32.xlu0 %v1017, 64
        %v1020 = vpop.permute.xlu0 %1019
        %v1022 = vmul.f32 %v1004, %v1020
        %1023 = vst.msk [vmem:[#allocation2 + $0x10] sm:$0xff] %vm472, %v1022
        %v1024 = vpack.c.bf16 %v1022, %v1022
        %v1025 = vld [vmem:[#allocation3 + $0x30] sm:$0xff]
        %v1026 = vld [vmem:[#allocation3 + $0x38] sm:$0xff]
        %v1028 = vsel %vm472, %v1024, 0
        %1030 = vmatprep.subr.bf16.mxu0 %v778
        %1031 = vmatpush1.bf16.msra.mxu0 %v777
        %1032 = vmatprep.subr.bf16.mxu0 %v780
        %1033 = vmatpush1.bf16.msra.mxu0 %v779
        %1034 = vmatprep.subr.bf16.mxu0 %v782
        %1035 = vmatpush1.bf16.msra.mxu0 %v781
        %1036 = vmatprep.subr.bf16.mxu0 %v784
        %1037 = vmatpush1.bf16.msra.mxu0 %v783
        %1038 = vmatprep.subr.bf16.mxu0 0
        %1039 = vmatpush1.bf16.msra.mxu0 0
        %1040 = vmatprep.subr.bf16.mxu0 0
        %1041 = vmatpush1.bf16.msra.mxu0 0
        %1042 = vmatprep.subr.bf16.mxu0 0
        %1043 = vmatpush1.bf16.msra.mxu0 0
        %1044 = vmatprep.subr.bf16.mxu0 0
        %1045 = vmatpush1.bf16.msra.mxu0 0
        %1046 = vmatprep.subr.bf16.mxu0 0
        %1047 = vmatpush1.bf16.msra.mxu0 0
        %1048 = vmatprep.subr.bf16.mxu0 0
        %1049 = vmatpush1.bf16.msra.mxu0 0
        %1050 = vmatprep.subr.bf16.mxu0 0
        %1051 = vmatpush1.bf16.msra.mxu0 0
        %1052 = vmatprep.subr.bf16.mxu0 0
        %1053 = vmatpush1.bf16.msra.mxu0 0
        %1054 = vmatprep.subr.bf16.mxu0 0
        %1055 = vmatpush1.bf16.msra.mxu0 0
        %1056 = vmatprep.subr.bf16.mxu0 0
        %1057 = vmatpush1.bf16.msra.mxu0 0
        %1058 = vmatprep.subr.bf16.mxu0 0
        %1059 = vmatpush1.bf16.msra.mxu0 0
        %1060 = vmatprep.subr.bf16.mxu0 0
        %1061 = vmatpush1.bf16.msra.mxu0 0
        %1062 = vmatprep.mubr.bf16.mxu0 0
        %1063 = vmatmul.mubr.bf16.gmra.mrb[0].mxu0 %v1028
        %v1064 = vpop.f32.mrb[0].mxu0
        %v1065 = vadd.f32 %v1025, %v1064
        %v1066 = vpop.f32.mrb[0].mxu0
        %v1067 = vadd.f32 %v1026, %v1066
        %v1068 = vpop.f32.mrb[0].mxu0
        %v1069 = vpop.f32.mrb[0].mxu0
        %1070 = vdwg.mxu0
        %v1071 = vxor.u32 %v1065, 2147483648
        %v1072 = vxor.u32 %v1067, 2147483648
        %v1073 = vmul.f32 %v1071, 1.442695
        %v1074 = vpow.pop %v1073
        %v1075 = vmul.f32 %v1072, 1.442695
        %v1076 = vpow.pop %v1075
        %v1077 = vadd.f32 %v1074, 1.0
        %v1078 = vadd.f32 %v1076, 1.0
        %v1079 = vrcp.pop %v1077
        %v1080 = vmul.f32 1.0, %v1079
        %v1081 = vrcp.pop %v1078
        %v1082 = vmul.f32 1.0, %v1081
        %v1083 = vtanh.pop %v1067
        %v1084 = vmul.f32 %v1080, %v1016
        %1086 = vrot.lane.b32.xlu0 %v1083, 64
        %v1087 = vpop.permute.xlu0 %1086
        %v1089 = vmul.f32 %v1080, %v1087
        %1091 = vrot.lane.b32.xlu0 %v1089, 64
        %v1092 = vpop.permute.xlu0 %1091
        %v1094 = vadd.f32 %v1084, %v1092
        %v1095 = vtanh.pop %v1094
        %1097 = vrot.lane.b32.xlu0 %v1095, 64
        %v1098 = vpop.permute.xlu0 %1097
        %v1100 = vmul.f32 %v1082, %v1098
        %1101 = vst.msk [vmem:[#allocation2 + $0x18] sm:$0xff] %vm472, %v1100
        %v1102 = vpack.c.bf16 %v1100, %v1100
        %v1103 = vld [vmem:[#allocation3 + $0x40] sm:$0xff]
        %v1104 = vld [vmem:[#allocation3 + $0x48] sm:$0xff]
        %v1106 = vsel %vm472, %v1102, 0
        %1108 = vmatprep.subr.bf16.mxu0 %v778
        %1109 = vmatpush1.bf16.msra.mxu0 %v777
        %1110 = vmatprep.subr.bf16.mxu0 %v780
        %1111 = vmatpush1.bf16.msra.mxu0 %v779
        %1112 = vmatprep.subr.bf16.mxu0 %v782
        %1113 = vmatpush1.bf16.msra.mxu0 %v781
        %1114 = vmatprep.subr.bf16.mxu0 %v784
        %1115 = vmatpush1.bf16.msra.mxu0 %v783
        %1116 = vmatprep.subr.bf16.mxu0 0
        %1117 = vmatpush1.bf16.msra.mxu0 0
        %1118 = vmatprep.subr.bf16.mxu0 0
        %1119 = vmatpush1.bf16.msra.mxu0 0
        %1120 = vmatprep.subr.bf16.mxu0 0
        %1121 = vmatpush1.bf16.msra.mxu0 0
        %1122 = vmatprep.subr.bf16.mxu0 0
        %1123 = vmatpush1.bf16.msra.mxu0 0
        %1124 = vmatprep.subr.bf16.mxu0 0
        %1125 = vmatpush1.bf16.msra.mxu0 0
        %1126 = vmatprep.subr.bf16.mxu0 0
        %1127 = vmatpush1.bf16.msra.mxu0 0
        %1128 = vmatprep.subr.bf16.mxu0 0
        %1129 = vmatpush1.bf16.msra.mxu0 0
        %1130 = vmatprep.subr.bf16.mxu0 0
        %1131 = vmatpush1.bf16.msra.mxu0 0
        %1132 = vmatprep.subr.bf16.mxu0 0
        %1133 = vmatpush1.bf16.msra.mxu0 0
        %1134 = vmatprep.subr.bf16.mxu0 0
        %1135 = vmatpush1.bf16.msra.mxu0 0
        %1136 = vmatprep.subr.bf16.mxu0 0
        %1137 = vmatpush1.bf16.msra.mxu0 0
        %1138 = vmatprep.subr.bf16.mxu0 0
        %1139 = vmatpush1.bf16.msra.mxu0 0
        %1140 = vmatprep.mubr.bf16.mxu0 0
        %1141 = vmatmul.mubr.bf16.gmra.mrb[0].mxu0 %v1106
        %v1142 = vpop.f32.mrb[0].mxu0
        %v1143 = vadd.f32 %v1103, %v1142
        %v1144 = vpop.f32.mrb[0].mxu0
        %v1145 = vadd.f32 %v1104, %v1144
        %v1146 = vpop.f32.mrb[0].mxu0
        %v1147 = vpop.f32.mrb[0].mxu0
        %1148 = vdwg.mxu0
        %v1149 = vxor.u32 %v1143, 2147483648
        %v1150 = vxor.u32 %v1145, 2147483648
        %v1151 = vmul.f32 %v1149, 1.442695
        %v1152 = vpow.pop %v1151
        %v1153 = vmul.f32 %v1150, 1.442695
        %v1154 = vpow.pop %v1153
        %v1155 = vadd.f32 %v1152, 1.0
        %v1156 = vadd.f32 %v1154, 1.0
        %v1157 = vrcp.pop %v1155
        %v1158 = vmul.f32 1.0, %v1157
        %v1159 = vrcp.pop %v1156
        %v1160 = vmul.f32 1.0, %v1159
        %v1161 = vtanh.pop %v1145
        %v1162 = vmul.f32 %v1158, %v1094
        %1164 = vrot.lane.b32.xlu0 %v1161, 64
        %v1165 = vpop.permute.xlu0 %1164
        %v1167 = vmul.f32 %v1158, %v1165
        %1169 = vrot.lane.b32.xlu0 %v1167, 64
        %v1170 = vpop.permute.xlu0 %1169
        %v1172 = vadd.f32 %v1162, %v1170
        %v1173 = vtanh.pop %v1172
        %1175 = vrot.lane.b32.xlu0 %v1173, 64
        %v1176 = vpop.permute.xlu0 %1175
        %v1178 = vmul.f32 %v1160, %v1176
        %1179 = vst.msk [vmem:[#allocation2 + $0x20] sm:$0xff] %vm472, %v1178
        %v1180 = vpack.c.bf16 %v1178, %v1178
        %v1181 = vld [vmem:[#allocation3 + $0x50] sm:$0xff]
        %v1182 = vld [vmem:[#allocation3 + $0x58] sm:$0xff]
        %v1184 = vsel %vm472, %v1180, 0
        %1186 = vmatprep.subr.bf16.mxu0 %v778
        %1187 = vmatpush1.bf16.msra.mxu0 %v777
        %1188 = vmatprep.subr.bf16.mxu0 %v780
        %1189 = vmatpush1.bf16.msra.mxu0 %v779
        %1190 = vmatprep.subr.bf16.mxu0 %v782
        %1191 = vmatpush1.bf16.msra.mxu0 %v781
        %1192 = vmatprep.subr.bf16.mxu0 %v784
        %1193 = vmatpush1.bf16.msra.mxu0 %v783
        %1194 = vmatprep.subr.bf16.mxu0 0
        %1195 = vmatpush1.bf16.msra.mxu0 0
        %1196 = vmatprep.subr.bf16.mxu0 0
        %1197 = vmatpush1.bf16.msra.mxu0 0
        %1198 = vmatprep.subr.bf16.mxu0 0
        %1199 = vmatpush1.bf16.msra.mxu0 0
        %1200 = vmatprep.subr.bf16.mxu0 0
        %1201 = vmatpush1.bf16.msra.mxu0 0
        %1202 = vmatprep.subr.bf16.mxu0 0
        %1203 = vmatpush1.bf16.msra.mxu0 0
        %1204 = vmatprep.subr.bf16.mxu0 0
        %1205 = vmatpush1.bf16.msra.mxu0 0
        %1206 = vmatprep.subr.bf16.mxu0 0
        %1207 = vmatpush1.bf16.msra.mxu0 0
        %1208 = vmatprep.subr.bf16.mxu0 0
        %1209 = vmatpush1.bf16.msra.mxu0 0
        %1210 = vmatprep.subr.bf16.mxu0 0
        %1211 = vmatpush1.bf16.msra.mxu0 0
        %1212 = vmatprep.subr.bf16.mxu0 0
        %1213 = vmatpush1.bf16.msra.mxu0 0
        %1214 = vmatprep.subr.bf16.mxu0 0
        %1215 = vmatpush1.bf16.msra.mxu0 0
        %1216 = vmatprep.subr.bf16.mxu0 0
        %1217 = vmatpush1.bf16.msra.mxu0 0
        %1218 = vmatprep.mubr.bf16.mxu0 0
        %1219 = vmatmul.mubr.bf16.gmra.mrb[0].mxu0 %v1184
        %v1220 = vpop.f32.mrb[0].mxu0
        %v1221 = vadd.f32 %v1181, %v1220
        %v1222 = vpop.f32.mrb[0].mxu0
        %v1223 = vadd.f32 %v1182, %v1222
        %v1224 = vpop.f32.mrb[0].mxu0
        %v1225 = vpop.f32.mrb[0].mxu0
        %1226 = vdwg.mxu0
        %v1227 = vxor.u32 %v1221, 2147483648
        %v1228 = vxor.u32 %v1223, 2147483648
        %v1229 = vmul.f32 %v1227, 1.442695
        %v1230 = vpow.pop %v1229
        %v1231 = vmul.f32 %v1228, 1.442695
        %v1232 = vpow.pop %v1231
        %v1233 = vadd.f32 %v1230, 1.0
        %v1234 = vadd.f32 %v1232, 1.0
        %v1235 = vrcp.pop %v1233
        %v1236 = vmul.f32 1.0, %v1235
        %v1237 = vrcp.pop %v1234
        %v1238 = vmul.f32 1.0, %v1237
        %v1239 = vtanh.pop %v1223
        %v1240 = vmul.f32 %v1236, %v1172
        %1242 = vrot.lane.b32.xlu0 %v1239, 64
        %v1243 = vpop.permute.xlu0 %1242
        %v1245 = vmul.f32 %v1236, %v1243
        %1247 = vrot.lane.b32.xlu0 %v1245, 64
        %v1248 = vpop.permute.xlu0 %1247
        %v1250 = vadd.f32 %v1240, %v1248
        %v1251 = vtanh.pop %v1250
        %1253 = vrot.lane.b32.xlu0 %v1251, 64
        %v1254 = vpop.permute.xlu0 %1253
        %v1256 = vmul.f32 %v1238, %v1254
        %1257 = vst.msk [vmem:[#allocation2 + $0x28] sm:$0xff] %vm472, %v1256
        %v1258 = vpack.c.bf16 %v1256, %v1256
        %v1259 = vld [vmem:[#allocation3 + $0x60] sm:$0xff]
        %v1260 = vld [vmem:[#allocation3 + $0x68] sm:$0xff]
        %v1262 = vsel %vm472, %v1258, 0
        %1264 = vmatprep.subr.bf16.mxu0 %v778
        %1265 = vmatpush1.bf16.msra.mxu0 %v777
        %1266 = vmatprep.subr.bf16.mxu0 %v780
        %1267 = vmatpush1.bf16.msra.mxu0 %v779
        %1268 = vmatprep.subr.bf16.mxu0 %v782
        %1269 = vmatpush1.bf16.msra.mxu0 %v781
        %1270 = vmatprep.subr.bf16.mxu0 %v784
        %1271 = vmatpush1.bf16.msra.mxu0 %v783
        %1272 = vmatprep.subr.bf16.mxu0 0
        %1273 = vmatpush1.bf16.msra.mxu0 0
        %1274 = vmatprep.subr.bf16.mxu0 0
        %1275 = vmatpush1.bf16.msra.mxu0 0
        %1276 = vmatprep.subr.bf16.mxu0 0
        %1277 = vmatpush1.bf16.msra.mxu0 0
        %1278 = vmatprep.subr.bf16.mxu0 0
        %1279 = vmatpush1.bf16.msra.mxu0 0
        %1280 = vmatprep.subr.bf16.mxu0 0
        %1281 = vmatpush1.bf16.msra.mxu0 0
        %1282 = vmatprep.subr.bf16.mxu0 0
        %1283 = vmatpush1.bf16.msra.mxu0 0
        %1284 = vmatprep.subr.bf16.mxu0 0
        %1285 = vmatpush1.bf16.msra.mxu0 0
        %1286 = vmatprep.subr.bf16.mxu0 0
        %1287 = vmatpush1.bf16.msra.mxu0 0
        %1288 = vmatprep.subr.bf16.mxu0 0
        %1289 = vmatpush1.bf16.msra.mxu0 0
        %1290 = vmatprep.subr.bf16.mxu0 0
        %1291 = vmatpush1.bf16.msra.mxu0 0
        %1292 = vmatprep.subr.bf16.mxu0 0
        %1293 = vmatpush1.bf16.msra.mxu0 0
        %1294 = vmatprep.subr.bf16.mxu0 0
        %1295 = vmatpush1.bf16.msra.mxu0 0
        %1296 = vmatprep.mubr.bf16.mxu0 0
        %1297 = vmatmul.mubr.bf16.gmra.mrb[0].mxu0 %v1262
        %v1298 = vpop.f32.mrb[0].mxu0
        %v1299 = vadd.f32 %v1259, %v1298
        %v1300 = vpop.f32.mrb[0].mxu0
        %v1301 = vadd.f32 %v1260, %v1300
        %v1302 = vpop.f32.mrb[0].mxu0
        %v1303 = vpop.f32.mrb[0].mxu0
        %1304 = vdwg.mxu0
        %v1305 = vxor.u32 %v1299, 2147483648
        %v1306 = vxor.u32 %v1301, 2147483648
        %v1307 = vmul.f32 %v1305, 1.442695
        %v1308 = vpow.pop %v1307
        %v1309 = vmul.f32 %v1306, 1.442695
        %v1310 = vpow.pop %v1309
        %v1311 = vadd.f32 %v1308, 1.0
        %v1312 = vadd.f32 %v1310, 1.0
        %v1313 = vrcp.pop %v1311
        %v1314 = vmul.f32 1.0, %v1313
        %v1315 = vrcp.pop %v1312
        %v1316 = vmul.f32 1.0, %v1315
        %v1317 = vtanh.pop %v1301
        %v1318 = vmul.f32 %v1314, %v1250
        %1320 = vrot.lane.b32.xlu0 %v1317, 64
        %v1321 = vpop.permute.xlu0 %1320
        %v1323 = vmul.f32 %v1314, %v1321
        %1325 = vrot.lane.b32.xlu0 %v1323, 64
        %v1326 = vpop.permute.xlu0 %1325
        %v1328 = vadd.f32 %v1318, %v1326
        %v1329 = vtanh.pop %v1328
        %1331 = vrot.lane.b32.xlu0 %v1329, 64
        %v1332 = vpop.permute.xlu0 %1331
        %v1334 = vmul.f32 %v1316, %v1332
        %1335 = vst.msk [vmem:[#allocation2 + $0x30] sm:$0xff] %vm472, %v1334
        %v1336 = vpack.c.bf16 %v1334, %v1334
        %v1337 = vld [vmem:[#allocation3 + $0x70] sm:$0xff]
        %v1338 = vld [vmem:[#allocation3 + $0x78] sm:$0xff]
        %v1340 = vsel %vm472, %v1336, 0
        %1342 = vmatprep.subr.bf16.mxu0 %v778
        %1343 = vmatpush1.bf16.msra.mxu0 %v777
        %1344 = vmatprep.subr.bf16.mxu0 %v780
        %1345 = vmatpush1.bf16.msra.mxu0 %v779
        %1346 = vmatprep.subr.bf16.mxu0 %v782
        %1347 = vmatpush1.bf16.msra.mxu0 %v781
        %1348 = vmatprep.subr.bf16.mxu0 %v784
        %1349 = vmatpush1.bf16.msra.mxu0 %v783
        %1350 = vmatprep.subr.bf16.mxu0 0
        %1351 = vmatpush1.bf16.msra.mxu0 0
        %1352 = vmatprep.subr.bf16.mxu0 0
        %1353 = vmatpush1.bf16.msra.mxu0 0
        %1354 = vmatprep.subr.bf16.mxu0 0
        %1355 = vmatpush1.bf16.msra.mxu0 0
        %1356 = vmatprep.subr.bf16.mxu0 0
        %1357 = vmatpush1.bf16.msra.mxu0 0
        %1358 = vmatprep.subr.bf16.mxu0 0
        %1359 = vmatpush1.bf16.msra.mxu0 0
        %1360 = vmatprep.subr.bf16.mxu0 0
        %1361 = vmatpush1.bf16.msra.mxu0 0
        %1362 = vmatprep.subr.bf16.mxu0 0
        %1363 = vmatpush1.bf16.msra.mxu0 0
        %1364 = vmatprep.subr.bf16.mxu0 0
        %1365 = vmatpush1.bf16.msra.mxu0 0
        %1366 = vmatprep.subr.bf16.mxu0 0
        %1367 = vmatpush1.bf16.msra.mxu0 0
        %1368 = vmatprep.subr.bf16.mxu0 0
        %1369 = vmatpush1.bf16.msra.mxu0 0
        %1370 = vmatprep.subr.bf16.mxu0 0
        %1371 = vmatpush1.bf16.msra.mxu0 0
        %1372 = vmatprep.subr.bf16.mxu0 0
        %1373 = vmatpush1.bf16.msra.mxu0 0
        %1374 = vmatprep.mubr.bf16.mxu0 0
        %1375 = vmatmul.mubr.bf16.gmra.mrb[0].mxu0 %v1340
        %v1376 = vpop.f32.mrb[0].mxu0
        %v1377 = vadd.f32 %v1337, %v1376
        %v1378 = vpop.f32.mrb[0].mxu0
        %v1379 = vadd.f32 %v1338, %v1378
        %v1380 = vpop.f32.mrb[0].mxu0
        %v1381 = vpop.f32.mrb[0].mxu0
        %1382 = vdwg.mxu0
        %v1383 = vxor.u32 %v1377, 2147483648
        %v1384 = vxor.u32 %v1379, 2147483648
        %v1385 = vmul.f32 %v1383, 1.442695
        %v1386 = vpow.pop %v1385
        %v1387 = vmul.f32 %v1384, 1.442695
        %v1388 = vpow.pop %v1387
        %v1389 = vadd.f32 %v1386, 1.0
        %v1390 = vadd.f32 %v1388, 1.0
        %v1391 = vrcp.pop %v1389
        %v1392 = vmul.f32 1.0, %v1391
        %v1393 = vrcp.pop %v1390
        %v1394 = vmul.f32 1.0, %v1393
        %v1395 = vtanh.pop %v1379
        %v1396 = vmul.f32 %v1392, %v1328
        %1398 = vrot.lane.b32.xlu0 %v1395, 64
        %v1399 = vpop.permute.xlu0 %1398
        %v1401 = vmul.f32 %v1392, %v1399
        %1403 = vrot.lane.b32.xlu0 %v1401, 64
        %v1404 = vpop.permute.xlu0 %1403
        %v1406 = vadd.f32 %v1396, %v1404
        %v1407 = vtanh.pop %v1406
        %1409 = vrot.lane.b32.xlu0 %v1407, 64
        %v1410 = vpop.permute.xlu0 %1409
        %v1412 = vmul.f32 %v1394, %v1410
        %1413 = vst.msk [vmem:[#allocation2 + $0x38] sm:$0xff] %vm472, %v1412
        %p1414 = scmp.eq.s32.totalorder %s24, 2
        // Predicated region
        $region65: #{lstm_forward.1} parent=47 // pred_check
          %p1415 = pneg %p1414
        $region66: #{lstm_forward.1} parent=47 // pred_check_branch
          %1417 = sbr.rel (%p1415) target = $region68
        $region67: #{lstm_forward.1} parent=47 // pred_region
          %v1418 = vld [vmem:[%s5] sm:$0xff]
          %v1419 = vld [vmem:[%s5 + $0x8] sm:$0xff]
          %v1420 = vld [vmem:[%s5 + $0x10] sm:$0xff]
          %v1421 = vld [vmem:[%s5 + $0x18] sm:$0xff]
          %v1422 = vld [vmem:[%s5 + $0x20] sm:$0xff]
          %v1423 = vld [vmem:[%s5 + $0x28] sm:$0xff]
          %v1424 = vld [vmem:[%s5 + $0x30] sm:$0xff]
          %v1425 = vld [vmem:[%s5 + $0x38] sm:$0xff]
          %v1426 = vld [vmem:[%s6] sm:$0x1]
          %v1428 = vlaneseq
          %v1429 = vshrl.u32 %v1428, 7
          %v1430 = vsub.s32 0, %v1429
          %v1431 = vrot.slane %v1426, %v1430
          %v1434 = vsel %vm472, %v1412, 0
          %1436 = vmatprep.subr.mxu0 0.0
          %1437 = vmatpush1.msra.mxu0 %v1418
          %1438 = vmatprep.subr.mxu0 0.0
          %1439 = vmatpush1.msra.mxu0 %v1419
          %1440 = vmatprep.subr.mxu0 0.0
          %1441 = vmatpush1.msra.mxu0 %v1420
          %1442 = vmatprep.subr.mxu0 0.0
          %1443 = vmatpush1.msra.mxu0 %v1421
          %1444 = vmatprep.subr.mxu0 0.0
          %1445 = vmatpush1.msra.mxu0 %v1422
          %1446 = vmatprep.subr.mxu0 0.0
          %1447 = vmatpush1.msra.mxu0 %v1423
          %1448 = vmatprep.subr.mxu0 0.0
          %1449 = vmatpush1.msra.mxu0 %v1424
          %1450 = vmatprep.subr.mxu0 0.0
          %1451 = vmatpush1.msra.mxu0 %v1425
          %1452 = vmatprep.subr.mxu0 0.0
          %1453 = vmatpush1.msra.mxu0 0.0
          %1454 = vmatprep.subr.mxu0 0.0
          %1455 = vmatpush1.msra.mxu0 0.0
          %1456 = vmatprep.subr.mxu0 0.0
          %1457 = vmatpush1.msra.mxu0 0.0
          %1458 = vmatprep.subr.mxu0 0.0
          %1459 = vmatpush1.msra.mxu0 0.0
          %1460 = vmatprep.subr.mxu0 0.0
          %1461 = vmatpush1.msra.mxu0 0.0
          %1462 = vmatprep.subr.mxu0 0.0
          %1463 = vmatpush1.msra.mxu0 0.0
          %1464 = vmatprep.subr.mxu0 0.0
          %1465 = vmatpush1.msra.mxu0 0.0
          %1466 = vmatprep.subr.mxu0 0.0
          %1467 = vmatpush1.msra.mxu0 0.0
          %1468 = vmatprep.subr.mxu0 0.0
          %1469 = vmatpush1.msra.mxu0 0.0
          %1470 = vmatprep.subr.mxu0 0.0
          %1471 = vmatpush1.msra.mxu0 0.0
          %1472 = vmatprep.subr.mxu0 0.0
          %1473 = vmatpush1.msra.mxu0 0.0
          %1474 = vmatprep.subr.mxu0 0.0
          %1475 = vmatpush1.msra.mxu0 0.0
          %1476 = vmatprep.subr.mxu0 0.0
          %1477 = vmatpush1.msra.mxu0 0.0
          %1478 = vmatprep.subr.mxu0 0.0
          %1479 = vmatpush1.msra.mxu0 0.0
          %1480 = vmatprep.subr.mxu0 0.0
          %1481 = vmatpush1.msra.mxu0 0.0
          %1482 = vmatprep.subr.mxu0 0.0
          %1483 = vmatpush1.msra.mxu0 0.0
          %1484 = vmatprep.subr.mxu0 0.0
          %1485 = vmatpush1.msra.mxu0 0.0
          %1486 = vmatprep.subr.mxu0 0.0
          %1487 = vmatpush1.msra.mxu0 0.0
          %1488 = vmatprep.subr.mxu0 0.0
          %1489 = vmatpush1.msra.mxu0 0.0
          %1490 = vmatprep.subr.mxu0 0.0
          %1491 = vmatpush1.msra.mxu0 0.0
          %1492 = vmatprep.subr.mxu0 0.0
          %1493 = vmatpush1.msra.mxu0 0.0
          %1494 = vmatprep.subr.mxu0 0.0
          %1495 = vmatpush1.msra.mxu0 0.0
          %1496 = vmatprep.subr.mxu0 0.0
          %1497 = vmatpush1.msra.mxu0 0.0
          %1498 = vmatprep.subr.mxu0 0.0
          %1499 = vmatpush1.msra.mxu0 0.0
          %1500 = vmatprep.mubr.f32.mxu0 0.0
          %1501 = vmatmul.mubr.f32.gmra.mrb[0].mxu0 %v1434
          %v1502 = vpop.f32.mrb[0].mxu0
          %v1503 = vadd.f32 %v1431, %v1502
          %v1504 = vpop.f32.mrb[0].mxu0
          %1505 = vdwg.mxu0
          %vm1506 = vcmask 15360
          %1507 = vst.msk [vmem:[%s7] sm:$0xff] %vm1506, %v1503
        $region68: #{lstm_forward.1} parent=47 // pred_fallthru
          _
        // Predicated region
        $region69: #{lstm_forward.1} parent=47 // pred_check
          %p1508 = pneg %p204
        $region70: #{lstm_forward.1} parent=47 // pred_check_branch
          %1510 = sbr.rel (%p1508) target = $region72
        $region71: #{lstm_forward.1} parent=47 // pred_region
          _
        $region72: #{lstm_forward.1} parent=47 // pred_fallthru
          _
        // Predicated region
        $region73: #{lstm_forward.1} parent=47 // pred_check
          %p1511 = pneg %p204
        $region74: #{lstm_forward.1} parent=47 // pred_check_branch
          %1513 = sbr.rel (%p1511) target = $region76
        $region75: #{lstm_forward.1} parent=47 // pred_region
          _
        $region76: #{lstm_forward.1} parent=47 // pred_fallthru
          _
      $region48: #{lstm_forward.1} parent=5 // pred_fallthru
        _
      %p1514 = scmp.le.s32.totalorder 2, %s19
      // Predicated region
      $region77: #{lstm_forward.1} parent=5 // pred_check
        %p1515 = pneg %p1514
      $region78: #{lstm_forward.1} parent=5 // pred_check_branch
        %1517 = sbr.rel (%p1515) target = $region80
      $region79: #{lstm_forward.1} parent=5 // pred_region
        %s1518 = ssub.s32 %s19, 2
      $region80: #{lstm_forward.1} parent=5 // pred_fallthru
        _
    $region6: #{lstm_forward.1} parent=1 // loop_footer
      %s23 = sadd.s32 1, %s19
    $region7: #{lstm_forward.1} parent=1 // loop_footer_branch
      %18 = sbr.rel target = $region3
    $region8: #{lstm_forward.1} parent=1 // loop_exit
      _
    %1519 = vsyncpa [#allocation5], 1
    %s1520 = scalar_lea.sflag [#allocation5], 1
    %1521 = vsyncpa %s1520, 1
    %1522 = vsyncpa [#allocation7], 1
    %s1523 = scalar_lea.sflag [#allocation7], 1
    %1524 = vsyncpa %s1523, 1

</llo_original>
